<compile_context>
chip_gen: v7x
topology: tpu7x:2x2x1
jax: 0.10.0
libtpu: 0.0.40
codegen_flags: <defaults>
</compile_context>

<pallas_src>
import numpy as np
import jax
import jax.numpy as jnp
from jax.experimental import pallas as pl
from jax.experimental.pallas import tpu as pltpu


# --------------------------------------------------------------------------
# Fused kernel: per-level 1x1conv+BN+ReLU, pre-upsample pooling, sigmoid+softmax
# scale weights, one stacked bilinear-upsample matmul, weighted fusion and the
# lighting head — all in a single grid step over the whole (small) batch.
# --------------------------------------------------------------------------
def _make_fusion_kernel(hw_list, B):
    HW0, HW1, HW2, HW3 = hw_list
    inv_hw0 = 1.0 / float(HW0)
    o1, o2, o3 = 0, HW1, HW1 + HW2            # offsets inside the packed tw buffer

    def kernel(x0_ref, x1_ref, x2_ref, x3_ref,
               w0_ref, w1_ref, w2_ref, w3_ref,
               b0_ref, b1_ref, b2_ref, b3_ref,
               kstk_ref, kbar1_ref, kbar2_ref, kbar3_ref,
               wpt_ref, bp_ref, wl1t_ref, bl1_ref, wl2t_ref, bl2_ref,
               fused_ref, wts_ref, light_ref,
               pooled_scr, tw_scr, pall_scr):

        def transform(x_ref, w_ref, bias_ref, b):
            # relu(Wf @ x + bias): bf16 [D,C] @ bf16 [C,HWi] -> f32 [D,HWi]
            t = jnp.dot(w_ref[...], x_ref[b], preferred_element_type=jnp.float32)
            return jnp.maximum(t + bias_ref[...], 0.0)

        wpt = wpt_ref[...]                    # [D, S] f32
        bp = bp_ref[...]                      # [1, S] f32
        kstk = kstk_ref[...]                  # [HW1+HW2+HW3, HW0] bf16
        kbar1 = kbar1_ref[...]                # [1, HW1] f32
        kbar2 = kbar2_ref[...]                # [1, HW2] f32
        kbar3 = kbar3_ref[...]                # [1, HW3] f32

        for b in range(B):                    # B is tiny -> statically unrolled
            t0 = transform(x0_ref, w0_ref, b0_ref, b)       # [D, HW0]
            t1 = transform(x1_ref, w1_ref, b1_ref, b)       # [D, HW1]
            t2 = transform(x2_ref, w2_ref, b2_ref, b)       # [D, HW2]
            t3 = transform(x3_ref, w3_ref, b3_ref, b)       # [D, HW3]

            # Per-scale pooling BEFORE upsampling (exact: mean_HW0(K @ t) = kbar . t)
            pooled_scr[:, 0:1] = jnp.sum(t0, axis=1, keepdims=True) * inv_hw0
            pooled_scr[:, 1:2] = jnp.sum(t1 * kbar1, axis=1, keepdims=True)
            pooled_scr[:, 2:3] = jnp.sum(t2 * kbar2, axis=1, keepdims=True)
            pooled_scr[:, 3:4] = jnp.sum(t3 * kbar3, axis=1, keepdims=True)
            pooled = pooled_scr[...]                          # [D, S]

            # Scale logits: sigmoid(wp_s . pooled_s + b_s), then softmax over scales.
            logit = jax.nn.sigmoid(
                jnp.sum(wpt * pooled, axis=0, keepdims=True) + bp)     # [1, S]
            m = jnp.max(logit, axis=1, keepdims=True)
            e = jnp.exp(logit - m)
            w = e / jnp.sum(e, axis=1, keepdims=True)                   # [1, S]

            # ONE stacked upsample matmul over all coarse scales.
            tw_scr[:, o1:o1 + HW1] = (t1 * w[0:1, 1:2]).astype(jnp.bfloat16)
            tw_scr[:, o2:o2 + HW2] = (t2 * w[0:1, 2:3]).astype(jnp.bfloat16)
            tw_scr[:, o3:o3 + HW3] = (t3 * w[0:1, 3:4]).astype(jnp.bfloat16)
            fused_ref[b] = (t0 * w[0:1, 0:1]
                            + jnp.dot(tw_scr[...], kstk,
                                      preferred_element_type=jnp.float32))

            wts_ref[b:b + 1, :] = w
            # pooled(fused) = sum_s w_s * pooled_s (exact, the mean is linear).
            pall_scr[:, b:b + 1] = jnp.sum(pooled * w, axis=1, keepdims=True)

        # Lighting head on the whole batch: fc(D->128) -> relu -> fc(128->9).
        h = jnp.maximum(
            jnp.dot(wl1t_ref[...], pall_scr[...],
                    preferred_element_type=jnp.float32) + bl1_ref[...], 0.0)
        light_ref[...] = (jnp.dot(wl2t_ref[...], h,
                                  preferred_element_type=jnp.float32) + bl2_ref[...])

    return kernel


def fuse_pyramid(xs, Wfs, bfs, Kstk, kbars, wpt, bp, wl1t, bl1c, wl2t, bl2c, hw_list):
    """xs[i]: [B, C_i, HW_i] bf16; Wfs[i]: [D, C_i] bf16; bfs[i]: [D,1] f32;
    Kstk: [HW1+HW2+HW3, HW0] bf16; kbars[j]: [1, HW_j] f32; wpt: [D,S]; bp: [1,S];
    wl1t: [128,D]; bl1c: [128,1]; wl2t: [9,128]; bl2c: [9,1]."""
    S = len(xs)
    assert S == 4, "kernel is specialised for a 4-level pyramid"
    B = xs[0].shape[0]
    D = Wfs[0].shape[0]
    HW0 = hw_list[0]
    HWsum = sum(hw_list[1:])
    LO = wl2t.shape[0]

    kernel = _make_fusion_kernel(hw_list, B)

    in_specs, args = [], []
    for x in xs:
        in_specs.append(pl.BlockSpec(x.shape, lambda g: (0, 0, 0)))
        args.append(x)
    for W in Wfs:
        in_specs.append(pl.BlockSpec(W.shape, lambda g: (0, 0)))
        args.append(W)
    for bias in bfs:
        in_specs.append(pl.BlockSpec(bias.shape, lambda g: (0, 0)))
        args.append(bias)
    for p in (Kstk, *kbars, wpt, bp, wl1t, bl1c, wl2t, bl2c):
        in_specs.append(pl.BlockSpec(p.shape, lambda g: (0, 0)))
        args.append(p)

    out_shape = (
        jax.ShapeDtypeStruct((B, D, HW0), jnp.float32),   # fused, NCHW-flat
        jax.ShapeDtypeStruct((B, S), jnp.float32),        # scale weights
        jax.ShapeDtypeStruct((LO, B), jnp.float32),       # lighting (transposed)
    )
    out_specs = (
        pl.BlockSpec((B, D, HW0), lambda g: (0, 0, 0)),
        pl.BlockSpec((B, S), lambda g: (0, 0)),
        pl.BlockSpec((LO, B), lambda g: (0, 0)),
    )

    # Advisory cost estimate for XLA scheduling around the custom call.
    flops = sum(2 * B * D * x.shape[1] * x.shape[2] for x in xs)
    flops += 2 * B * D * Kstk.shape[0] * Kstk.shape[1]
    flops += 2 * B * (wl1t.shape[0] * wl1t.shape[1] + wl2t.shape[0] * wl2t.shape[1])
    bytes_accessed = sum(int(np.prod(a.shape)) * a.dtype.itemsize for a in args)
    bytes_accessed += (B * D * HW0 + B * S + LO * B) * 4
    cost = pl.CostEstimate(flops=int(flops), transcendentals=int(2 * B * S),
                           bytes_accessed=int(bytes_accessed))

    return pl.pallas_call(
        kernel,
        out_shape=out_shape,
        grid=(1,),
        in_specs=in_specs,
        out_specs=out_specs,
        scratch_shapes=[
            pltpu.VMEM((D, S), jnp.float32),        # packed per-scale pooled features
            pltpu.VMEM((D, HWsum), jnp.bfloat16),   # packed weighted tiles for stacked matmul
            pltpu.VMEM((D, B), jnp.float32),        # pooled fused feature for lighting head
        ],
        compiler_params=pltpu.CompilerParams(
            dimension_semantics=("arbitrary",),
            vmem_limit_bytes=4 * 1024 * 1024),
        cost_estimate=cost,
    )(*args)


# --------------------------------------------------------------------------
# Glue: bilinear interp matrices, BN folding, parameter init, forward
# --------------------------------------------------------------------------
def _interp_matrix_1d(n_out, n_in):
    """Reproduces F.interpolate bilinear, align_corners=False, along one axis."""
    M = np.zeros((n_out, n_in), dtype=np.float32)
    scale = n_in / n_out
    for o in range(n_out):
        src = max((o + 0.5) * scale - 0.5, 0.0)
        i0 = min(int(np.floor(src)), n_in - 1)
        i1 = min(i0 + 1, n_in - 1)
        lam = src - i0
        M[o, i0] += 1.0 - lam
        M[o, i1] += lam
    return M


def make_interp_constants(H0, W0, spatials):
    """Stacked transposed Kronecker interp matrix + exact pre-upsample pooling vectors."""
    Ks = [np.kron(_interp_matrix_1d(H0, h), _interp_matrix_1d(W0, w))
          for (h, w) in spatials[1:]]                                   # each [HW0, HW_i]
    Kstk = jnp.asarray(np.concatenate([K.T for K in Ks], axis=0), jnp.bfloat16)
    kbars = [jnp.asarray(K.mean(axis=0, keepdims=True), jnp.float32) for K in Ks]
    return Kstk, kbars


def init_params(key, feature_dims, output_dim, light_hidden=128, light_out=9):
    eps = 1e-5
    keys = iter(jax.random.split(key, 64))
    Wfs, bfs = [], []
    for C in feature_dims:
        wc = 0.1 * jax.random.normal(next(keys), (output_dim, C), jnp.float32)
        bc = 0.1 * jax.random.normal(next(keys), (output_dim,), jnp.float32)
        gamma = 1.0 + 0.1 * jax.random.normal(next(keys), (output_dim,), jnp.float32)
        beta = 0.1 * jax.random.normal(next(keys), (output_dim,), jnp.float32)
        mean = 0.1 * jax.random.normal(next(keys), (output_dim,), jnp.float32)
        var = 1.0 + 0.1 * jnp.abs(jax.random.normal(next(keys), (output_dim,), jnp.float32))
        scale = gamma / jnp.sqrt(var + eps)
        Wfs.append((scale[:, None] * wc).astype(jnp.bfloat16))          # [D, C] bf16
        bfs.append((scale * (bc - mean) + beta)[:, None])               # [D, 1] f32
    S = len(feature_dims)
    wpt = 0.1 * jax.random.normal(next(keys), (output_dim, S), jnp.float32)   # [D, S]
    bp = 0.1 * jax.random.normal(next(keys), (1, S), jnp.float32)
    wl1t = 0.1 * jax.random.normal(next(keys), (light_hidden, output_dim), jnp.float32)
    bl1c = 0.1 * jax.random.normal(next(keys), (light_hidden, 1), jnp.float32)
    wl2t = 0.1 * jax.random.normal(next(keys), (light_out, light_hidden), jnp.float32)
    bl2c = 0.1 * jax.random.normal(next(keys), (light_out, 1), jnp.float32)
    return (Wfs, bfs, wpt, bp, wl1t, bl1c, wl2t, bl2c)


def feature_pyramid_fusion_forward(features, params, interp):
    (Wfs, bfs, wpt, bp, wl1t, bl1c, wl2t, bl2c) = params
    Kstk, kbars = interp
    B = features[0].shape[0]
    D = Wfs[0].shape[0]
    H0, W0 = features[0].shape[2], features[0].shape[3]
    hw_list = [f.shape[2] * f.shape[3] for f in features]
    # NCHW -> [B, C, H*W]: free, contiguous reshape (no transposes around the kernel).
    xs = [f.reshape(f.shape[0], f.shape[1], -1).astype(jnp.bfloat16) for f in features]
    fused_flat, wts, light_t = fuse_pyramid(
        xs, Wfs, bfs, Kstk, kbars, wpt, bp, wl1t, bl1c, wl2t, bl2c, hw_list)
    fused = fused_flat.reshape(B, D, H0, W0)          # already channels-first
    light = light_t.T                                 # [9, B] -> [B, 9]
    return fused, wts, light


def reference_forward(features, params, interp, spatials):
    """Pure-JAX reference using the same (bf16-quantised) weights / interp matrix."""
    HI = jax.lax.Precision.HIGHEST
    (Wfs, bfs, wpt, bp, wl1t, bl1c, wl2t, bl2c) = params
    Kstk, _ = interp
    B = features[0].shape[0]
    D = Wfs[0].shape[0]
    H0, W0 = features[0].shape[2], features[0].shape[3]
    hw = [h * w for (h, w) in spatials]
    offs = np.concatenate([[0], np.cumsum(hw[1:])]).astype(int)
    ups = []
    for i, x in enumerate(features):
        C = x.shape[1]
        xf = x.reshape(B, C, -1).astype(jnp.bfloat16).astype(jnp.float32)
        Wf = Wfs[i].astype(jnp.float32)
        t = jnp.maximum(jnp.einsum('dc,bcn->bdn', Wf, xf, precision=HI)
                        + bfs[i][None], 0.0)
        if i > 0:
            Kt = Kstk[offs[i - 1]:offs[i], :].astype(jnp.float32)       # [HW_i, HW0]
            t = jnp.einsum('bdn,nm->bdm', t, Kt, precision=HI)
        ups.append(t)                                                   # [B, D, HW0]
    pooled = jnp.stack([u.mean(axis=2) for u in ups], axis=1)           # [B, S, D]
    logits = jax.nn.sigmoid(jnp.einsum('bsd,ds->bs', pooled, wpt, precision=HI) + bp)
    wts = jax.nn.softmax(logits, axis=1)
    fused = sum(ups[s] * wts[:, s][:, None, None] for s in range(len(ups)))
    pf = fused.mean(axis=2)                                             # [B, D]
    h = jnp.maximum(jnp.einsum('bd,hd->bh', pf, wl1t, precision=HI)
                    + bl1c[:, 0][None, :], 0.0)
    light = jnp.einsum('bh,oh->bo', h, wl2t, precision=HI) + bl2c[:, 0][None, :]
    return fused.reshape(B, D, H0, W0), wts, light


if __name__ == "__main__":
    # Small shapes consistent with the module's forward (a 4-level pyramid).
    B = 2
    feature_dims = [8, 16, 32, 64]
    output_dim = 16
    spatials = [(16, 16), (8, 8), (4, 4), (2, 2)]   # each level half the resolution

    key = jax.random.PRNGKey(0)
    k_in, k_par = jax.random.split(key)
    in_keys = jax.random.split(k_in, len(feature_dims))
    features = [jax.random.normal(in_keys[i], (B, feature_dims[i], h, w), jnp.float32)
                for i, (h, w) in enumerate(spatials)]

    params = init_params(k_par, feature_dims, output_dim)
    H0, W0 = spatials[0]
    interp = make_interp_constants(H0, W0, spatials)

    fused, wts, light = feature_pyramid_fusion_forward(features, params, interp)
    jax.block_until_ready((fused, wts, light))

    # Correctness check against the pure-JAX reference.
    rf, rw, rl = reference_forward(features, params, interp, spatials)
    assert fused.shape == (B, output_dim, H0, W0)
    assert wts.shape == (B, len(feature_dims))
    assert light.shape == (B, 9)
    np.testing.assert_allclose(np.asarray(fused), np.asarray(rf), rtol=1e-2, atol=1e-2)
    np.testing.assert_allclose(np.asarray(wts), np.asarray(rw), rtol=1e-2, atol=1e-2)
    np.testing.assert_allclose(np.asarray(light), np.asarray(rl), rtol=1e-2, atol=1e-2)

    print("KERNEL_OK")
</pallas_src>

<mosaic_0001>
module attributes {stable_mosaic.version = 11 : i64} {
  func.func @kernel(%arg0: i32, %arg1: memref<2x8x256xbf16, #tpu.memory_space<vmem>>, %arg2: memref<2x16x64xbf16, #tpu.memory_space<vmem>>, %arg3: memref<2x32x16xbf16, #tpu.memory_space<vmem>>, %arg4: memref<2x64x4xbf16, #tpu.memory_space<vmem>>, %arg5: memref<16x8xbf16, #tpu.memory_space<vmem>>, %arg6: memref<16x16xbf16, #tpu.memory_space<vmem>>, %arg7: memref<16x32xbf16, #tpu.memory_space<vmem>>, %arg8: memref<16x64xbf16, #tpu.memory_space<vmem>>, %arg9: memref<16x1xf32, #tpu.memory_space<vmem>>, %arg10: memref<16x1xf32, #tpu.memory_space<vmem>>, %arg11: memref<16x1xf32, #tpu.memory_space<vmem>>, %arg12: memref<16x1xf32, #tpu.memory_space<vmem>>, %arg13: memref<84x256xbf16, #tpu.memory_space<vmem>>, %arg14: memref<1x64xf32, #tpu.memory_space<vmem>>, %arg15: memref<1x16xf32, #tpu.memory_space<vmem>>, %arg16: memref<1x4xf32, #tpu.memory_space<vmem>>, %arg17: memref<16x4xf32, #tpu.memory_space<vmem>>, %arg18: memref<1x4xf32, #tpu.memory_space<vmem>>, %arg19: memref<128x16xf32, #tpu.memory_space<vmem>>, %arg20: memref<128x1xf32, #tpu.memory_space<vmem>>, %arg21: memref<9x128xf32, #tpu.memory_space<vmem>>, %arg22: memref<9x1xf32, #tpu.memory_space<vmem>>, %arg23: memref<2x16x256xf32, #tpu.memory_space<vmem>>, %arg24: memref<2x4xf32, #tpu.memory_space<vmem>>, %arg25: memref<9x2xf32, #tpu.memory_space<vmem>>, %arg26: memref<16x4xf32, #tpu.memory_space<vmem>>, %arg27: memref<16x84xbf16, #tpu.memory_space<vmem>>, %arg28: memref<16x2xf32, #tpu.memory_space<vmem>>) attributes {dimension_semantics = [#tpu.dimension_semantics<arbitrary>], iteration_bounds = array<i64: 1>, scalar_prefetch = 0 : i64, scratch_operands = 3 : i64, tpu.core_type = #tpu.core_type<tc>, window_params = [{pipeline_mode = #tpu.pipeline_mode<synchronous>, transform_indices = @transform_0, window_bounds = array<i64: 2, 8, 256>}, {pipeline_mode = #tpu.pipeline_mode<synchronous>, transform_indices = @transform_1, window_bounds = array<i64: 2, 16, 64>}, {pipeline_mode = #tpu.pipeline_mode<synchronous>, transform_indices = @transform_2, window_bounds = array<i64: 2, 32, 16>}, {pipeline_mode = #tpu.pipeline_mode<synchronous>, transform_indices = @transform_3, window_bounds = array<i64: 2, 64, 4>}, {pipeline_mode = #tpu.pipeline_mode<synchronous>, transform_indices = @transform_4, window_bounds = array<i64: 16, 8>}, {pipeline_mode = #tpu.pipeline_mode<synchronous>, transform_indices = @transform_5, window_bounds = array<i64: 16, 16>}, {pipeline_mode = #tpu.pipeline_mode<synchronous>, transform_indices = @transform_6, window_bounds = array<i64: 16, 32>}, {pipeline_mode = #tpu.pipeline_mode<synchronous>, transform_indices = @transform_7, window_bounds = array<i64: 16, 64>}, {pipeline_mode = #tpu.pipeline_mode<synchronous>, transform_indices = @transform_8, window_bounds = array<i64: 16, 1>}, {pipeline_mode = #tpu.pipeline_mode<synchronous>, transform_indices = @transform_9, window_bounds = array<i64: 16, 1>}, {pipeline_mode = #tpu.pipeline_mode<synchronous>, transform_indices = @transform_10, window_bounds = array<i64: 16, 1>}, {pipeline_mode = #tpu.pipeline_mode<synchronous>, transform_indices = @transform_11, window_bounds = array<i64: 16, 1>}, {pipeline_mode = #tpu.pipeline_mode<synchronous>, transform_indices = @transform_12, window_bounds = array<i64: 84, 256>}, {pipeline_mode = #tpu.pipeline_mode<synchronous>, transform_indices = @transform_13, window_bounds = array<i64: 1, 64>}, {pipeline_mode = #tpu.pipeline_mode<synchronous>, transform_indices = @transform_14, window_bounds = array<i64: 1, 16>}, {pipeline_mode = #tpu.pipeline_mode<synchronous>, transform_indices = @transform_15, window_bounds = array<i64: 1, 4>}, {pipeline_mode = #tpu.pipeline_mode<synchronous>, transform_indices = @transform_16, window_bounds = array<i64: 16, 4>}, {pipeline_mode = #tpu.pipeline_mode<synchronous>, transform_indices = @transform_17, window_bounds = array<i64: 1, 4>}, {pipeline_mode = #tpu.pipeline_mode<synchronous>, transform_indices = @transform_18, window_bounds = array<i64: 128, 16>}, {pipeline_mode = #tpu.pipeline_mode<synchronous>, transform_indices = @transform_19, window_bounds = array<i64: 128, 1>}, {pipeline_mode = #tpu.pipeline_mode<synchronous>, transform_indices = @transform_20, window_bounds = array<i64: 9, 128>}, {pipeline_mode = #tpu.pipeline_mode<synchronous>, transform_indices = @transform_21, window_bounds = array<i64: 9, 1>}, {pipeline_mode = #tpu.pipeline_mode<synchronous>, transform_indices = @transform_22, window_bounds = array<i64: 2, 16, 256>}, {pipeline_mode = #tpu.pipeline_mode<synchronous>, transform_indices = @transform_23, window_bounds = array<i64: 2, 4>}, {pipeline_mode = #tpu.pipeline_mode<synchronous>, transform_indices = @transform_24, window_bounds = array<i64: 9, 2>}]} {
    %c0 = arith.constant 0 : index
    %c0_0 = arith.constant 0 : index
    %0 = vector.load %arg17[%c0, %c0_0] : memref<16x4xf32, #tpu.memory_space<vmem>>, vector<16x4xf32>
    %c0_1 = arith.constant 0 : index
    %c0_2 = arith.constant 0 : index
    %1 = vector.load %arg18[%c0_1, %c0_2] : memref<1x4xf32, #tpu.memory_space<vmem>>, vector<1x4xf32>
    %c0_3 = arith.constant 0 : index
    %c0_4 = arith.constant 0 : index
    %2 = vector.load %arg13[%c0_3, %c0_4] : memref<84x256xbf16, #tpu.memory_space<vmem>>, vector<84x256xbf16>
    %c0_5 = arith.constant 0 : index
    %c0_6 = arith.constant 0 : index
    %3 = vector.load %arg14[%c0_5, %c0_6] : memref<1x64xf32, #tpu.memory_space<vmem>>, vector<1x64xf32>
    %c0_7 = arith.constant 0 : index
    %c0_8 = arith.constant 0 : index
    %4 = vector.load %arg15[%c0_7, %c0_8] : memref<1x16xf32, #tpu.memory_space<vmem>>, vector<1x16xf32>
    %c0_9 = arith.constant 0 : index
    %c0_10 = arith.constant 0 : index
    %5 = vector.load %arg16[%c0_9, %c0_10] : memref<1x4xf32, #tpu.memory_space<vmem>>, vector<1x4xf32>
    %c0_11 = arith.constant 0 : index
    %c0_12 = arith.constant 0 : index
    %6 = vector.load %arg5[%c0_11, %c0_12] : memref<16x8xbf16, #tpu.memory_space<vmem>>, vector<16x8xbf16>
    %c0_13 = arith.constant 0 : index
    %c0_14 = arith.constant 0 : index
    %c0_15 = arith.constant 0 : index
    %7 = vector.load %arg1[%c0_13, %c0_14, %c0_15] : memref<2x8x256xbf16, #tpu.memory_space<vmem>>, vector<1x8x256xbf16>
    %8 = vector.shape_cast %7 : vector<1x8x256xbf16> to vector<8x256xbf16>
    %cst = arith.constant dense<0.000000e+00> : vector<16x256xf32>
    %9 = tpu.matmul %6, %8, %cst {dimension_numbers = #tpu.dot_dimension_numbers<[1], [0], [0], [1], [0, 0, 1, 1], [], []>} : vector<16x8xbf16>, vector<8x256xbf16>, vector<16x256xf32> -> vector<16x256xf32>
    %c0_16 = arith.constant 0 : index
    %c0_17 = arith.constant 0 : index
    %10 = vector.load %arg9[%c0_16, %c0_17] : memref<16x1xf32, #tpu.memory_space<vmem>>, vector<16x1xf32>
    %11 = vector.broadcast %10 : vector<16x1xf32> to vector<16x256xf32>
    %12 = arith.addf %9, %11 : vector<16x256xf32>
    %cst_18 = arith.constant 0.000000e+00 : f32
    %13 = vector.broadcast %cst_18 : f32 to vector<16x256xf32>
    %14 = arith.maximumf %12, %13 : vector<16x256xf32>
    %c0_19 = arith.constant 0 : index
    %c0_20 = arith.constant 0 : index
    %15 = vector.load %arg6[%c0_19, %c0_20] : memref<16x16xbf16, #tpu.memory_space<vmem>>, vector<16x16xbf16>
    %c0_21 = arith.constant 0 : index
    %c0_22 = arith.constant 0 : index
    %c0_23 = arith.constant 0 : index
    %16 = vector.load %arg2[%c0_21, %c0_22, %c0_23] : memref<2x16x64xbf16, #tpu.memory_space<vmem>>, vector<1x16x64xbf16>
    %17 = vector.shape_cast %16 : vector<1x16x64xbf16> to vector<16x64xbf16>
    %cst_24 = arith.constant dense<0.000000e+00> : vector<16x64xf32>
    %18 = tpu.matmul %15, %17, %cst_24 {dimension_numbers = #tpu.dot_dimension_numbers<[1], [0], [0], [1], [0, 0, 1, 1], [], []>} : vector<16x16xbf16>, vector<16x64xbf16>, vector<16x64xf32> -> vector<16x64xf32>
    %c0_25 = arith.constant 0 : index
    %c0_26 = arith.constant 0 : index
    %19 = vector.load %arg10[%c0_25, %c0_26] : memref<16x1xf32, #tpu.memory_space<vmem>>, vector<16x1xf32>
    %20 = vector.broadcast %19 : vector<16x1xf32> to vector<16x64xf32>
    %21 = arith.addf %18, %20 : vector<16x64xf32>
    %cst_27 = arith.constant 0.000000e+00 : f32
    %22 = vector.broadcast %cst_27 : f32 to vector<16x64xf32>
    %23 = arith.maximumf %21, %22 : vector<16x64xf32>
    %c0_28 = arith.constant 0 : index
    %c0_29 = arith.constant 0 : index
    %24 = vector.load %arg7[%c0_28, %c0_29] : memref<16x32xbf16, #tpu.memory_space<vmem>>, vector<16x32xbf16>
    %c0_30 = arith.constant 0 : index
    %c0_31 = arith.constant 0 : index
    %c0_32 = arith.constant 0 : index
    %25 = vector.load %arg3[%c0_30, %c0_31, %c0_32] : memref<2x32x16xbf16, #tpu.memory_space<vmem>>, vector<1x32x16xbf16>
    %26 = vector.shape_cast %25 : vector<1x32x16xbf16> to vector<32x16xbf16>
    %cst_33 = arith.constant dense<0.000000e+00> : vector<16x16xf32>
    %27 = tpu.matmul %24, %26, %cst_33 {dimension_numbers = #tpu.dot_dimension_numbers<[1], [0], [0], [1], [0, 0, 1, 1], [], []>} : vector<16x32xbf16>, vector<32x16xbf16>, vector<16x16xf32> -> vector<16x16xf32>
    %c0_34 = arith.constant 0 : index
    %c0_35 = arith.constant 0 : index
    %28 = vector.load %arg11[%c0_34, %c0_35] : memref<16x1xf32, #tpu.memory_space<vmem>>, vector<16x1xf32>
    %29 = vector.broadcast %28 : vector<16x1xf32> to vector<16x16xf32>
    %30 = arith.addf %27, %29 : vector<16x16xf32>
    %cst_36 = arith.constant 0.000000e+00 : f32
    %31 = vector.broadcast %cst_36 : f32 to vector<16x16xf32>
    %32 = arith.maximumf %30, %31 : vector<16x16xf32>
    %c0_37 = arith.constant 0 : index
    %c0_38 = arith.constant 0 : index
    %33 = vector.load %arg8[%c0_37, %c0_38] : memref<16x64xbf16, #tpu.memory_space<vmem>>, vector<16x64xbf16>
    %c0_39 = arith.constant 0 : index
    %c0_40 = arith.constant 0 : index
    %c0_41 = arith.constant 0 : index
    %34 = vector.load %arg4[%c0_39, %c0_40, %c0_41] : memref<2x64x4xbf16, #tpu.memory_space<vmem>>, vector<1x64x4xbf16>
    %35 = vector.shape_cast %34 : vector<1x64x4xbf16> to vector<64x4xbf16>
    %cst_42 = arith.constant dense<0.000000e+00> : vector<16x4xf32>
    %36 = tpu.matmul %33, %35, %cst_42 {dimension_numbers = #tpu.dot_dimension_numbers<[1], [0], [0], [1], [0, 0, 1, 1], [], []>} : vector<16x64xbf16>, vector<64x4xbf16>, vector<16x4xf32> -> vector<16x4xf32>
    %c0_43 = arith.constant 0 : index
    %c0_44 = arith.constant 0 : index
    %37 = vector.load %arg12[%c0_43, %c0_44] : memref<16x1xf32, #tpu.memory_space<vmem>>, vector<16x1xf32>
    %38 = vector.broadcast %37 : vector<16x1xf32> to vector<16x4xf32>
    %39 = arith.addf %36, %38 : vector<16x4xf32>
    %cst_45 = arith.constant 0.000000e+00 : f32
    %40 = vector.broadcast %cst_45 : f32 to vector<16x4xf32>
    %41 = arith.maximumf %39, %40 : vector<16x4xf32>
    %cst_46 = arith.constant dense<0.000000e+00> : vector<16xf32>
    %42 = vector.multi_reduction <add>, %14, %cst_46 [1] : vector<16x256xf32> to vector<16xf32>
    %43 = vector.shape_cast %42 : vector<16xf32> to vector<16x1xf32>
    %cst_47 = arith.constant 3.906250e-03 : f32
    %44 = vector.broadcast %cst_47 : f32 to vector<16x1xf32>
    %45 = arith.mulf %43, %44 : vector<16x1xf32>
    %c0_48 = arith.constant 0 : index
    %c0_49 = arith.constant 0 : index
    %46 = vector.load %arg26[%c0_48, %c0_49] : memref<16x4xf32, #tpu.memory_space<vmem>>, vector<16x1xf32>
    tpu.vector_store %arg26[%c0_48, %c0_49], %45 {strides = array<i32>} : memref<16x4xf32, #tpu.memory_space<vmem>>, vector<16x1xf32>,
    %47 = vector.broadcast %3 : vector<1x64xf32> to vector<16x64xf32>
    %48 = arith.mulf %23, %47 : vector<16x64xf32>
    %cst_50 = arith.constant dense<0.000000e+00> : vector<16xf32>
    %49 = vector.multi_reduction <add>, %48, %cst_50 [1] : vector<16x64xf32> to vector<16xf32>
    %50 = vector.shape_cast %49 : vector<16xf32> to vector<16x1xf32>
    %c0_51 = arith.constant 0 : index
    %c1 = arith.constant 1 : index
    %51 = vector.load %arg26[%c0_51, %c1] : memref<16x4xf32, #tpu.memory_space<vmem>>, vector<16x1xf32>
    tpu.vector_store %arg26[%c0_51, %c1], %50 {strides = array<i32>} : memref<16x4xf32, #tpu.memory_space<vmem>>, vector<16x1xf32>,
    %52 = vector.broadcast %4 : vector<1x16xf32> to vector<16x16xf32>
    %53 = arith.mulf %32, %52 : vector<16x16xf32>
    %cst_52 = arith.constant dense<0.000000e+00> : vector<16xf32>
    %54 = vector.multi_reduction <add>, %53, %cst_52 [1] : vector<16x16xf32> to vector<16xf32>
    %55 = vector.shape_cast %54 : vector<16xf32> to vector<16x1xf32>
    %c0_53 = arith.constant 0 : index
    %c2 = arith.constant 2 : index
    %56 = vector.load %arg26[%c0_53, %c2] : memref<16x4xf32, #tpu.memory_space<vmem>>, vector<16x1xf32>
    tpu.vector_store %arg26[%c0_53, %c2], %55 {strides = array<i32>} : memref<16x4xf32, #tpu.memory_space<vmem>>, vector<16x1xf32>,
    %57 = vector.broadcast %5 : vector<1x4xf32> to vector<16x4xf32>
    %58 = arith.mulf %41, %57 : vector<16x4xf32>
    %cst_54 = arith.constant dense<0.000000e+00> : vector<16xf32>
    %59 = vector.multi_reduction <add>, %58, %cst_54 [1] : vector<16x4xf32> to vector<16xf32>
    %60 = vector.shape_cast %59 : vector<16xf32> to vector<16x1xf32>
    %c0_55 = arith.constant 0 : index
    %c3 = arith.constant 3 : index
    %61 = vector.load %arg26[%c0_55, %c3] : memref<16x4xf32, #tpu.memory_space<vmem>>, vector<16x1xf32>
    tpu.vector_store %arg26[%c0_55, %c3], %60 {strides = array<i32>} : memref<16x4xf32, #tpu.memory_space<vmem>>, vector<16x1xf32>,
    %c0_56 = arith.constant 0 : index
    %c0_57 = arith.constant 0 : index
    %62 = vector.load %arg26[%c0_56, %c0_57] : memref<16x4xf32, #tpu.memory_space<vmem>>, vector<16x4xf32>
    %63 = arith.mulf %0, %62 : vector<16x4xf32>
    %cst_58 = arith.constant dense<0.000000e+00> : vector<4xf32>
    %64 = vector.multi_reduction <add>, %63, %cst_58 [0] : vector<16x4xf32> to vector<4xf32>
    %65 = vector.shape_cast %64 : vector<4xf32> to vector<1x4xf32>
    %66 = arith.addf %65, %1 : vector<1x4xf32>
    %67 = arith.negf %66 : vector<1x4xf32>
    %68 = math.exp %67 : vector<1x4xf32>
    %cst_59 = arith.constant 1.000000e+00 : f32
    %69 = vector.broadcast %cst_59 : f32 to vector<1x4xf32>
    %70 = arith.addf %69, %68 : vector<1x4xf32>
    %71 = arith.divf %69, %70 : vector<1x4xf32>
    %cst_60 = arith.constant dense<0xFF800000> : vector<1xf32>
    %72 = vector.multi_reduction <maximumf>, %71, %cst_60 [1] : vector<1x4xf32> to vector<1xf32>
    %73 = vector.shape_cast %72 : vector<1xf32> to vector<1x1xf32>
    %74 = vector.broadcast %73 : vector<1x1xf32> to vector<1x4xf32>
    %75 = arith.subf %71, %74 : vector<1x4xf32>
    %76 = math.exp %75 : vector<1x4xf32>
    %cst_61 = arith.constant dense<0.000000e+00> : vector<1xf32>
    %77 = vector.multi_reduction <add>, %76, %cst_61 [1] : vector<1x4xf32> to vector<1xf32>
    %78 = vector.shape_cast %77 : vector<1xf32> to vector<1x1xf32>
    %79 = vector.broadcast %78 : vector<1x1xf32> to vector<1x4xf32>
    %80 = arith.divf %76, %79 : vector<1x4xf32>
    %81 = vector.extract_strided_slice %80 {offsets = [0, 1], sizes = [1, 1], strides = [1, 1]} : vector<1x4xf32> to vector<1x1xf32>
    %82 = vector.broadcast %81 : vector<1x1xf32> to vector<16x64xf32>
    %83 = arith.mulf %23, %82 : vector<16x64xf32>
    %84 = arith.truncf %83 : vector<16x64xf32> to vector<16x64xbf16>
    %c0_62 = arith.constant 0 : index
    %c0_63 = arith.constant 0 : index
    %85 = vector.load %arg27[%c0_62, %c0_63] : memref<16x84xbf16, #tpu.memory_space<vmem>>, vector<16x64xbf16>
    tpu.vector_store %arg27[%c0_62, %c0_63], %84 {strides = array<i32>} : memref<16x84xbf16, #tpu.memory_space<vmem>>, vector<16x64xbf16>,
    %86 = vector.extract_strided_slice %80 {offsets = [0, 2], sizes = [1, 1], strides = [1, 1]} : vector<1x4xf32> to vector<1x1xf32>
    %87 = vector.broadcast %86 : vector<1x1xf32> to vector<16x16xf32>
    %88 = arith.mulf %32, %87 : vector<16x16xf32>
    %89 = arith.truncf %88 : vector<16x16xf32> to vector<16x16xbf16>
    %c0_64 = arith.constant 0 : index
    %c64 = arith.constant 64 : index
    %90 = vector.load %arg27[%c0_64, %c64] : memref<16x84xbf16, #tpu.memory_space<vmem>>, vector<16x16xbf16>
    tpu.vector_store %arg27[%c0_64, %c64], %89 {strides = array<i32>} : memref<16x84xbf16, #tpu.memory_space<vmem>>, vector<16x16xbf16>,
    %91 = vector.extract_strided_slice %80 {offsets = [0, 3], sizes = [1, 1], strides = [1, 1]} : vector<1x4xf32> to vector<1x1xf32>
    %92 = vector.broadcast %91 : vector<1x1xf32> to vector<16x4xf32>
    %93 = arith.mulf %41, %92 : vector<16x4xf32>
    %94 = arith.truncf %93 : vector<16x4xf32> to vector<16x4xbf16>
    %c0_65 = arith.constant 0 : index
    %c80 = arith.constant 80 : index
    %95 = vector.load %arg27[%c0_65, %c80] : memref<16x84xbf16, #tpu.memory_space<vmem>>, vector<16x4xbf16>
    tpu.vector_store %arg27[%c0_65, %c80], %94 {strides = array<i32>} : memref<16x84xbf16, #tpu.memory_space<vmem>>, vector<16x4xbf16>,
    %96 = vector.extract_strided_slice %80 {offsets = [0, 0], sizes = [1, 1], strides = [1, 1]} : vector<1x4xf32> to vector<1x1xf32>
    %97 = vector.broadcast %96 : vector<1x1xf32> to vector<16x256xf32>
    %98 = arith.mulf %14, %97 : vector<16x256xf32>
    %c0_66 = arith.constant 0 : index
    %c0_67 = arith.constant 0 : index
    %99 = vector.load %arg27[%c0_66, %c0_67] : memref<16x84xbf16, #tpu.memory_space<vmem>>, vector<16x84xbf16>
    %cst_68 = arith.constant dense<0.000000e+00> : vector<16x256xf32>
    %100 = tpu.matmul %99, %2, %cst_68 {dimension_numbers = #tpu.dot_dimension_numbers<[1], [0], [0], [1], [0, 0, 1, 1], [], []>} : vector<16x84xbf16>, vector<84x256xbf16>, vector<16x256xf32> -> vector<16x256xf32>
    %101 = arith.addf %98, %100 : vector<16x256xf32>
    %c0_69 = arith.constant 0 : index
    %c0_70 = arith.constant 0 : index
    %c0_71 = arith.constant 0 : index
    %102 = vector.load %arg23[%c0_69, %c0_70, %c0_71] : memref<2x16x256xf32, #tpu.memory_space<vmem>>, vector<1x16x256xf32>
    %103 = vector.shape_cast %102 : vector<1x16x256xf32> to vector<16x256xf32>
    %104 = vector.shape_cast %101 : vector<16x256xf32> to vector<1x16x256xf32>
    tpu.vector_store %arg23[%c0_69, %c0_70, %c0_71], %104 {strides = array<i32>} : memref<2x16x256xf32, #tpu.memory_space<vmem>>, vector<1x16x256xf32>,
    %c0_72 = arith.constant 0 : index
    %c0_73 = arith.constant 0 : index
    %105 = vector.load %arg24[%c0_72, %c0_73] : memref<2x4xf32, #tpu.memory_space<vmem>>, vector<1x4xf32>
    tpu.vector_store %arg24[%c0_72, %c0_73], %80 {strides = array<i32>} : memref<2x4xf32, #tpu.memory_space<vmem>>, vector<1x4xf32>,
    %106 = vector.broadcast %80 : vector<1x4xf32> to vector<16x4xf32>
    %107 = arith.mulf %62, %106 : vector<16x4xf32>
    %cst_74 = arith.constant dense<0.000000e+00> : vector<16xf32>
    %108 = vector.multi_reduction <add>, %107, %cst_74 [1] : vector<16x4xf32> to vector<16xf32>
    %109 = vector.shape_cast %108 : vector<16xf32> to vector<16x1xf32>
    %c0_75 = arith.constant 0 : index
    %c0_76 = arith.constant 0 : index
    %110 = vector.load %arg28[%c0_75, %c0_76] : memref<16x2xf32, #tpu.memory_space<vmem>>, vector<16x1xf32>
    tpu.vector_store %arg28[%c0_75, %c0_76], %109 {strides = array<i32>} : memref<16x2xf32, #tpu.memory_space<vmem>>, vector<16x1xf32>,
    %c0_77 = arith.constant 0 : index
    %c0_78 = arith.constant 0 : index
    %111 = vector.load %arg5[%c0_77, %c0_78] : memref<16x8xbf16, #tpu.memory_space<vmem>>, vector<16x8xbf16>
    %c1_79 = arith.constant 1 : index
    %c0_80 = arith.constant 0 : index
    %c0_81 = arith.constant 0 : index
    %112 = vector.load %arg1[%c1_79, %c0_80, %c0_81] : memref<2x8x256xbf16, #tpu.memory_space<vmem>>, vector<1x8x256xbf16>
    %113 = vector.shape_cast %112 : vector<1x8x256xbf16> to vector<8x256xbf16>
    %cst_82 = arith.constant dense<0.000000e+00> : vector<16x256xf32>
    %114 = tpu.matmul %111, %113, %cst_82 {dimension_numbers = #tpu.dot_dimension_numbers<[1], [0], [0], [1], [0, 0, 1, 1], [], []>} : vector<16x8xbf16>, vector<8x256xbf16>, vector<16x256xf32> -> vector<16x256xf32>
    %c0_83 = arith.constant 0 : index
    %c0_84 = arith.constant 0 : index
    %115 = vector.load %arg9[%c0_83, %c0_84] : memref<16x1xf32, #tpu.memory_space<vmem>>, vector<16x1xf32>
    %116 = vector.broadcast %115 : vector<16x1xf32> to vector<16x256xf32>
    %117 = arith.addf %114, %116 : vector<16x256xf32>
    %cst_85 = arith.constant 0.000000e+00 : f32
    %118 = vector.broadcast %cst_85 : f32 to vector<16x256xf32>
    %119 = arith.maximumf %117, %118 : vector<16x256xf32>
    %c0_86 = arith.constant 0 : index
    %c0_87 = arith.constant 0 : index
    %120 = vector.load %arg6[%c0_86, %c0_87] : memref<16x16xbf16, #tpu.memory_space<vmem>>, vector<16x16xbf16>
    %c1_88 = arith.constant 1 : index
    %c0_89 = arith.constant 0 : index
    %c0_90 = arith.constant 0 : index
    %121 = vector.load %arg2[%c1_88, %c0_89, %c0_90] : memref<2x16x64xbf16, #tpu.memory_space<vmem>>, vector<1x16x64xbf16>
    %122 = vector.shape_cast %121 : vector<1x16x64xbf16> to vector<16x64xbf16>
    %cst_91 = arith.constant dense<0.000000e+00> : vector<16x64xf32>
    %123 = tpu.matmul %120, %122, %cst_91 {dimension_numbers = #tpu.dot_dimension_numbers<[1], [0], [0], [1], [0, 0, 1, 1], [], []>} : vector<16x16xbf16>, vector<16x64xbf16>, vector<16x64xf32> -> vector<16x64xf32>
    %c0_92 = arith.constant 0 : index
    %c0_93 = arith.constant 0 : index
    %124 = vector.load %arg10[%c0_92, %c0_93] : memref<16x1xf32, #tpu.memory_space<vmem>>, vector<16x1xf32>
    %125 = vector.broadcast %124 : vector<16x1xf32> to vector<16x64xf32>
    %126 = arith.addf %123, %125 : vector<16x64xf32>
    %cst_94 = arith.constant 0.000000e+00 : f32
    %127 = vector.broadcast %cst_94 : f32 to vector<16x64xf32>
    %128 = arith.maximumf %126, %127 : vector<16x64xf32>
    %c0_95 = arith.constant 0 : index
    %c0_96 = arith.constant 0 : index
    %129 = vector.load %arg7[%c0_95, %c0_96] : memref<16x32xbf16, #tpu.memory_space<vmem>>, vector<16x32xbf16>
    %c1_97 = arith.constant 1 : index
    %c0_98 = arith.constant 0 : index
    %c0_99 = arith.constant 0 : index
    %130 = vector.load %arg3[%c1_97, %c0_98, %c0_99] : memref<2x32x16xbf16, #tpu.memory_space<vmem>>, vector<1x32x16xbf16>
    %131 = vector.shape_cast %130 : vector<1x32x16xbf16> to vector<32x16xbf16>
    %cst_100 = arith.constant dense<0.000000e+00> : vector<16x16xf32>
    %132 = tpu.matmul %129, %131, %cst_100 {dimension_numbers = #tpu.dot_dimension_numbers<[1], [0], [0], [1], [0, 0, 1, 1], [], []>} : vector<16x32xbf16>, vector<32x16xbf16>, vector<16x16xf32> -> vector<16x16xf32>
    %c0_101 = arith.constant 0 : index
    %c0_102 = arith.constant 0 : index
    %133 = vector.load %arg11[%c0_101, %c0_102] : memref<16x1xf32, #tpu.memory_space<vmem>>, vector<16x1xf32>
    %134 = vector.broadcast %133 : vector<16x1xf32> to vector<16x16xf32>
    %135 = arith.addf %132, %134 : vector<16x16xf32>
    %cst_103 = arith.constant 0.000000e+00 : f32
    %136 = vector.broadcast %cst_103 : f32 to vector<16x16xf32>
    %137 = arith.maximumf %135, %136 : vector<16x16xf32>
    %c0_104 = arith.constant 0 : index
    %c0_105 = arith.constant 0 : index
    %138 = vector.load %arg8[%c0_104, %c0_105] : memref<16x64xbf16, #tpu.memory_space<vmem>>, vector<16x64xbf16>
    %c1_106 = arith.constant 1 : index
    %c0_107 = arith.constant 0 : index
    %c0_108 = arith.constant 0 : index
    %139 = vector.load %arg4[%c1_106, %c0_107, %c0_108] : memref<2x64x4xbf16, #tpu.memory_space<vmem>>, vector<1x64x4xbf16>
    %140 = vector.shape_cast %139 : vector<1x64x4xbf16> to vector<64x4xbf16>
    %cst_109 = arith.constant dense<0.000000e+00> : vector<16x4xf32>
    %141 = tpu.matmul %138, %140, %cst_109 {dimension_numbers = #tpu.dot_dimension_numbers<[1], [0], [0], [1], [0, 0, 1, 1], [], []>} : vector<16x64xbf16>, vector<64x4xbf16>, vector<16x4xf32> -> vector<16x4xf32>
    %c0_110 = arith.constant 0 : index
    %c0_111 = arith.constant 0 : index
    %142 = vector.load %arg12[%c0_110, %c0_111] : memref<16x1xf32, #tpu.memory_space<vmem>>, vector<16x1xf32>
    %143 = vector.broadcast %142 : vector<16x1xf32> to vector<16x4xf32>
    %144 = arith.addf %141, %143 : vector<16x4xf32>
    %cst_112 = arith.constant 0.000000e+00 : f32
    %145 = vector.broadcast %cst_112 : f32 to vector<16x4xf32>
    %146 = arith.maximumf %144, %145 : vector<16x4xf32>
    %cst_113 = arith.constant dense<0.000000e+00> : vector<16xf32>
    %147 = vector.multi_reduction <add>, %119, %cst_113 [1] : vector<16x256xf32> to vector<16xf32>
    %148 = vector.shape_cast %147 : vector<16xf32> to vector<16x1xf32>
    %cst_114 = arith.constant 3.906250e-03 : f32
    %149 = vector.broadcast %cst_114 : f32 to vector<16x1xf32>
    %150 = arith.mulf %148, %149 : vector<16x1xf32>
    %c0_115 = arith.constant 0 : index
    %c0_116 = arith.constant 0 : index
    %151 = vector.load %arg26[%c0_115, %c0_116] : memref<16x4xf32, #tpu.memory_space<vmem>>, vector<16x1xf32>
    tpu.vector_store %arg26[%c0_115, %c0_116], %150 {strides = array<i32>} : memref<16x4xf32, #tpu.memory_space<vmem>>, vector<16x1xf32>,
    %152 = vector.broadcast %3 : vector<1x64xf32> to vector<16x64xf32>
    %153 = arith.mulf %128, %152 : vector<16x64xf32>
    %cst_117 = arith.constant dense<0.000000e+00> : vector<16xf32>
    %154 = vector.multi_reduction <add>, %153, %cst_117 [1] : vector<16x64xf32> to vector<16xf32>
    %155 = vector.shape_cast %154 : vector<16xf32> to vector<16x1xf32>
    %c0_118 = arith.constant 0 : index
    %c1_119 = arith.constant 1 : index
    %156 = vector.load %arg26[%c0_118, %c1_119] : memref<16x4xf32, #tpu.memory_space<vmem>>, vector<16x1xf32>
    tpu.vector_store %arg26[%c0_118, %c1_119], %155 {strides = array<i32>} : memref<16x4xf32, #tpu.memory_space<vmem>>, vector<16x1xf32>,
    %157 = vector.broadcast %4 : vector<1x16xf32> to vector<16x16xf32>
    %158 = arith.mulf %137, %157 : vector<16x16xf32>
    %cst_120 = arith.constant dense<0.000000e+00> : vector<16xf32>
    %159 = vector.multi_reduction <add>, %158, %cst_120 [1] : vector<16x16xf32> to vector<16xf32>
    %160 = vector.shape_cast %159 : vector<16xf32> to vector<16x1xf32>
    %c0_121 = arith.constant 0 : index
    %c2_122 = arith.constant 2 : index
    %161 = vector.load %arg26[%c0_121, %c2_122] : memref<16x4xf32, #tpu.memory_space<vmem>>, vector<16x1xf32>
    tpu.vector_store %arg26[%c0_121, %c2_122], %160 {strides = array<i32>} : memref<16x4xf32, #tpu.memory_space<vmem>>, vector<16x1xf32>,
    %162 = vector.broadcast %5 : vector<1x4xf32> to vector<16x4xf32>
    %163 = arith.mulf %146, %162 : vector<16x4xf32>
    %cst_123 = arith.constant dense<0.000000e+00> : vector<16xf32>
    %164 = vector.multi_reduction <add>, %163, %cst_123 [1] : vector<16x4xf32> to vector<16xf32>
    %165 = vector.shape_cast %164 : vector<16xf32> to vector<16x1xf32>
    %c0_124 = arith.constant 0 : index
    %c3_125 = arith.constant 3 : index
    %166 = vector.load %arg26[%c0_124, %c3_125] : memref<16x4xf32, #tpu.memory_space<vmem>>, vector<16x1xf32>
    tpu.vector_store %arg26[%c0_124, %c3_125], %165 {strides = array<i32>} : memref<16x4xf32, #tpu.memory_space<vmem>>, vector<16x1xf32>,
    %c0_126 = arith.constant 0 : index
    %c0_127 = arith.constant 0 : index
    %167 = vector.load %arg26[%c0_126, %c0_127] : memref<16x4xf32, #tpu.memory_space<vmem>>, vector<16x4xf32>
    %168 = arith.mulf %0, %167 : vector<16x4xf32>
    %cst_128 = arith.constant dense<0.000000e+00> : vector<4xf32>
    %169 = vector.multi_reduction <add>, %168, %cst_128 [0] : vector<16x4xf32> to vector<4xf32>
    %170 = vector.shape_cast %169 : vector<4xf32> to vector<1x4xf32>
    %171 = arith.addf %170, %1 : vector<1x4xf32>
    %172 = arith.negf %171 : vector<1x4xf32>
    %173 = math.exp %172 : vector<1x4xf32>
    %cst_129 = arith.constant 1.000000e+00 : f32
    %174 = vector.broadcast %cst_129 : f32 to vector<1x4xf32>
    %175 = arith.addf %174, %173 : vector<1x4xf32>
    %176 = arith.divf %174, %175 : vector<1x4xf32>
    %cst_130 = arith.constant dense<0xFF800000> : vector<1xf32>
    %177 = vector.multi_reduction <maximumf>, %176, %cst_130 [1] : vector<1x4xf32> to vector<1xf32>
    %178 = vector.shape_cast %177 : vector<1xf32> to vector<1x1xf32>
    %179 = vector.broadcast %178 : vector<1x1xf32> to vector<1x4xf32>
    %180 = arith.subf %176, %179 : vector<1x4xf32>
    %181 = math.exp %180 : vector<1x4xf32>
    %cst_131 = arith.constant dense<0.000000e+00> : vector<1xf32>
    %182 = vector.multi_reduction <add>, %181, %cst_131 [1] : vector<1x4xf32> to vector<1xf32>
    %183 = vector.shape_cast %182 : vector<1xf32> to vector<1x1xf32>
    %184 = vector.broadcast %183 : vector<1x1xf32> to vector<1x4xf32>
    %185 = arith.divf %181, %184 : vector<1x4xf32>
    %186 = vector.extract_strided_slice %185 {offsets = [0, 1], sizes = [1, 1], strides = [1, 1]} : vector<1x4xf32> to vector<1x1xf32>
    %187 = vector.broadcast %186 : vector<1x1xf32> to vector<16x64xf32>
    %188 = arith.mulf %128, %187 : vector<16x64xf32>
    %189 = arith.truncf %188 : vector<16x64xf32> to vector<16x64xbf16>
    %c0_132 = arith.constant 0 : index
    %c0_133 = arith.constant 0 : index
    %190 = vector.load %arg27[%c0_132, %c0_133] : memref<16x84xbf16, #tpu.memory_space<vmem>>, vector<16x64xbf16>
    tpu.vector_store %arg27[%c0_132, %c0_133], %189 {strides = array<i32>} : memref<16x84xbf16, #tpu.memory_space<vmem>>, vector<16x64xbf16>,
    %191 = vector.extract_strided_slice %185 {offsets = [0, 2], sizes = [1, 1], strides = [1, 1]} : vector<1x4xf32> to vector<1x1xf32>
    %192 = vector.broadcast %191 : vector<1x1xf32> to vector<16x16xf32>
    %193 = arith.mulf %137, %192 : vector<16x16xf32>
    %194 = arith.truncf %193 : vector<16x16xf32> to vector<16x16xbf16>
    %c0_134 = arith.constant 0 : index
    %c64_135 = arith.constant 64 : index
    %195 = vector.load %arg27[%c0_134, %c64_135] : memref<16x84xbf16, #tpu.memory_space<vmem>>, vector<16x16xbf16>
    tpu.vector_store %arg27[%c0_134, %c64_135], %194 {strides = array<i32>} : memref<16x84xbf16, #tpu.memory_space<vmem>>, vector<16x16xbf16>,
    %196 = vector.extract_strided_slice %185 {offsets = [0, 3], sizes = [1, 1], strides = [1, 1]} : vector<1x4xf32> to vector<1x1xf32>
    %197 = vector.broadcast %196 : vector<1x1xf32> to vector<16x4xf32>
    %198 = arith.mulf %146, %197 : vector<16x4xf32>
    %199 = arith.truncf %198 : vector<16x4xf32> to vector<16x4xbf16>
    %c0_136 = arith.constant 0 : index
    %c80_137 = arith.constant 80 : index
    %200 = vector.load %arg27[%c0_136, %c80_137] : memref<16x84xbf16, #tpu.memory_space<vmem>>, vector<16x4xbf16>
    tpu.vector_store %arg27[%c0_136, %c80_137], %199 {strides = array<i32>} : memref<16x84xbf16, #tpu.memory_space<vmem>>, vector<16x4xbf16>,
    %201 = vector.extract_strided_slice %185 {offsets = [0, 0], sizes = [1, 1], strides = [1, 1]} : vector<1x4xf32> to vector<1x1xf32>
    %202 = vector.broadcast %201 : vector<1x1xf32> to vector<16x256xf32>
    %203 = arith.mulf %119, %202 : vector<16x256xf32>
    %c0_138 = arith.constant 0 : index
    %c0_139 = arith.constant 0 : index
    %204 = vector.load %arg27[%c0_138, %c0_139] : memref<16x84xbf16, #tpu.memory_space<vmem>>, vector<16x84xbf16>
    %cst_140 = arith.constant dense<0.000000e+00> : vector<16x256xf32>
    %205 = tpu.matmul %204, %2, %cst_140 {dimension_numbers = #tpu.dot_dimension_numbers<[1], [0], [0], [1], [0, 0, 1, 1], [], []>} : vector<16x84xbf16>, vector<84x256xbf16>, vector<16x256xf32> -> vector<16x256xf32>
    %206 = arith.addf %203, %205 : vector<16x256xf32>
    %c1_141 = arith.constant 1 : index
    %c0_142 = arith.constant 0 : index
    %c0_143 = arith.constant 0 : index
    %207 = vector.load %arg23[%c1_141, %c0_142, %c0_143] : memref<2x16x256xf32, #tpu.memory_space<vmem>>, vector<1x16x256xf32>
    %208 = vector.shape_cast %207 : vector<1x16x256xf32> to vector<16x256xf32>
    %209 = vector.shape_cast %206 : vector<16x256xf32> to vector<1x16x256xf32>
    tpu.vector_store %arg23[%c1_141, %c0_142, %c0_143], %209 {strides = array<i32>} : memref<2x16x256xf32, #tpu.memory_space<vmem>>, vector<1x16x256xf32>,
    %c1_144 = arith.constant 1 : index
    %c0_145 = arith.constant 0 : index
    %210 = vector.load %arg24[%c1_144, %c0_145] : memref<2x4xf32, #tpu.memory_space<vmem>>, vector<1x4xf32>
    tpu.vector_store %arg24[%c1_144, %c0_145], %185 {strides = array<i32>} : memref<2x4xf32, #tpu.memory_space<vmem>>, vector<1x4xf32>,
    %211 = vector.broadcast %185 : vector<1x4xf32> to vector<16x4xf32>
    %212 = arith.mulf %167, %211 : vector<16x4xf32>
    %cst_146 = arith.constant dense<0.000000e+00> : vector<16xf32>
    %213 = vector.multi_reduction <add>, %212, %cst_146 [1] : vector<16x4xf32> to vector<16xf32>
    %214 = vector.shape_cast %213 : vector<16xf32> to vector<16x1xf32>
    %c0_147 = arith.constant 0 : index
    %c1_148 = arith.constant 1 : index
    %215 = vector.load %arg28[%c0_147, %c1_148] : memref<16x2xf32, #tpu.memory_space<vmem>>, vector<16x1xf32>
    tpu.vector_store %arg28[%c0_147, %c1_148], %214 {strides = array<i32>} : memref<16x2xf32, #tpu.memory_space<vmem>>, vector<16x1xf32>,
    %c0_149 = arith.constant 0 : index
    %c0_150 = arith.constant 0 : index
    %216 = vector.load %arg19[%c0_149, %c0_150] : memref<128x16xf32, #tpu.memory_space<vmem>>, vector<128x16xf32>
    %c0_151 = arith.constant 0 : index
    %c0_152 = arith.constant 0 : index
    %217 = vector.load %arg28[%c0_151, %c0_152] : memref<16x2xf32, #tpu.memory_space<vmem>>, vector<16x2xf32>
    %cst_153 = arith.constant dense<0.000000e+00> : vector<128x2xf32>
    %218 = tpu.matmul %216, %217, %cst_153 {dimension_numbers = #tpu.dot_dimension_numbers<[1], [0], [0], [1], [0, 0, 1, 1], [], []>} : vector<128x16xf32>, vector<16x2xf32>, vector<128x2xf32> -> vector<128x2xf32>
    %c0_154 = arith.constant 0 : index
    %c0_155 = arith.constant 0 : index
    %219 = vector.load %arg20[%c0_154, %c0_155] : memref<128x1xf32, #tpu.memory_space<vmem>>, vector<128x1xf32>
    %220 = vector.broadcast %219 : vector<128x1xf32> to vector<128x2xf32>
    %221 = arith.addf %218, %220 : vector<128x2xf32>
    %cst_156 = arith.constant 0.000000e+00 : f32
    %222 = vector.broadcast %cst_156 : f32 to vector<128x2xf32>
    %223 = arith.maximumf %221, %222 : vector<128x2xf32>
    %c0_157 = arith.constant 0 : index
    %c0_158 = arith.constant 0 : index
    %224 = vector.load %arg21[%c0_157, %c0_158] : memref<9x128xf32, #tpu.memory_space<vmem>>, vector<9x128xf32>
    %cst_159 = arith.constant dense<0.000000e+00> : vector<9x2xf32>
    %225 = tpu.matmul %224, %223, %cst_159 {dimension_numbers = #tpu.dot_dimension_numbers<[1], [0], [0], [1], [0, 0, 1, 1], [], []>} : vector<9x128xf32>, vector<128x2xf32>, vector<9x2xf32> -> vector<9x2xf32>
    %c0_160 = arith.constant 0 : index
    %c0_161 = arith.constant 0 : index
    %226 = vector.load %arg22[%c0_160, %c0_161] : memref<9x1xf32, #tpu.memory_space<vmem>>, vector<9x1xf32>
    %227 = vector.broadcast %226 : vector<9x1xf32> to vector<9x2xf32>
    %228 = arith.addf %225, %227 : vector<9x2xf32>
    %c0_162 = arith.constant 0 : index
    %c0_163 = arith.constant 0 : index
    %229 = vector.load %arg25[%c0_162, %c0_163] : memref<9x2xf32, #tpu.memory_space<vmem>>, vector<9x2xf32>
    tpu.vector_store %arg25[%c0_162, %c0_163], %228 {strides = array<i32>} : memref<9x2xf32, #tpu.memory_space<vmem>>, vector<9x2xf32>,
    return
  }
  func.func @transform_0(%arg0: i32) -> (i32, i32, i32) {
    %c0_i32 = arith.constant 0 : i32
    %c0_i32_0 = arith.constant 0 : i32
    %c0_i32_1 = arith.constant 0 : i32
    %c0_i32_2 = arith.constant 0 : i32
    return %c0_i32, %c0_i32_0, %c0_i32_1 : i32, i32, i32
  }
  func.func @transform_1(%arg0: i32) -> (i32, i32, i32) {
    %c0_i32 = arith.constant 0 : i32
    %c0_i32_0 = arith.constant 0 : i32
    %c0_i32_1 = arith.constant 0 : i32
    %c0_i32_2 = arith.constant 0 : i32
    return %c0_i32, %c0_i32_0, %c0_i32_1 : i32, i32, i32
  }
  func.func @transform_2(%arg0: i32) -> (i32, i32, i32) {
    %c0_i32 = arith.constant 0 : i32
    %c0_i32_0 = arith.constant 0 : i32
    %c0_i32_1 = arith.constant 0 : i32
    %c0_i32_2 = arith.constant 0 : i32
    return %c0_i32, %c0_i32_0, %c0_i32_1 : i32, i32, i32
  }
  func.func @transform_3(%arg0: i32) -> (i32, i32, i32) {
    %c0_i32 = arith.constant 0 : i32
    %c0_i32_0 = arith.constant 0 : i32
    %c0_i32_1 = arith.constant 0 : i32
    %c0_i32_2 = arith.constant 0 : i32
    return %c0_i32, %c0_i32_0, %c0_i32_1 : i32, i32, i32
  }
  func.func @transform_4(%arg0: i32) -> (i32, i32) {
    %c0_i32 = arith.constant 0 : i32
    %c0_i32_0 = arith.constant 0 : i32
    %c0_i32_1 = arith.constant 0 : i32
    return %c0_i32, %c0_i32_0 : i32, i32
  }
  func.func @transform_5(%arg0: i32) -> (i32, i32) {
    %c0_i32 = arith.constant 0 : i32
    %c0_i32_0 = arith.constant 0 : i32
    %c0_i32_1 = arith.constant 0 : i32
    return %c0_i32, %c0_i32_0 : i32, i32
  }
  func.func @transform_6(%arg0: i32) -> (i32, i32) {
    %c0_i32 = arith.constant 0 : i32
    %c0_i32_0 = arith.constant 0 : i32
    %c0_i32_1 = arith.constant 0 : i32
    return %c0_i32, %c0_i32_0 : i32, i32
  }
  func.func @transform_7(%arg0: i32) -> (i32, i32) {
    %c0_i32 = arith.constant 0 : i32
    %c0_i32_0 = arith.constant 0 : i32
    %c0_i32_1 = arith.constant 0 : i32
    return %c0_i32, %c0_i32_0 : i32, i32
  }
  func.func @transform_8(%arg0: i32) -> (i32, i32) {
    %c0_i32 = arith.constant 0 : i32
    %c0_i32_0 = arith.constant 0 : i32
    %c0_i32_1 = arith.constant 0 : i32
    return %c0_i32, %c0_i32_0 : i32, i32
  }
  func.func @transform_9(%arg0: i32) -> (i32, i32) {
    %c0_i32 = arith.constant 0 : i32
    %c0_i32_0 = arith.constant 0 : i32
    %c0_i32_1 = arith.constant 0 : i32
    return %c0_i32, %c0_i32_0 : i32, i32
  }
  func.func @transform_10(%arg0: i32) -> (i32, i32) {
    %c0_i32 = arith.constant 0 : i32
    %c0_i32_0 = arith.constant 0 : i32
    %c0_i32_1 = arith.constant 0 : i32
    return %c0_i32, %c0_i32_0 : i32, i32
  }
  func.func @transform_11(%arg0: i32) -> (i32, i32) {
    %c0_i32 = arith.constant 0 : i32
    %c0_i32_0 = arith.constant 0 : i32
    %c0_i32_1 = arith.constant 0 : i32
    return %c0_i32, %c0_i32_0 : i32, i32
  }
  func.func @transform_12(%arg0: i32) -> (i32, i32) {
    %c0_i32 = arith.constant 0 : i32
    %c0_i32_0 = arith.constant 0 : i32
    %c0_i32_1 = arith.constant 0 : i32
    return %c0_i32, %c0_i32_0 : i32, i32
  }
  func.func @transform_13(%arg0: i32) -> (i32, i32) {
    %c0_i32 = arith.constant 0 : i32
    %c0_i32_0 = arith.constant 0 : i32
    %c0_i32_1 = arith.constant 0 : i32
    return %c0_i32, %c0_i32_0 : i32, i32
  }
  func.func @transform_14(%arg0: i32) -> (i32, i32) {
    %c0_i32 = arith.constant 0 : i32
    %c0_i32_0 = arith.constant 0 : i32
    %c0_i32_1 = arith.constant 0 : i32
    return %c0_i32, %c0_i32_0 : i32, i32
  }
  func.func @transform_15(%arg0: i32) -> (i32, i32) {
    %c0_i32 = arith.constant 0 : i32
    %c0_i32_0 = arith.constant 0 : i32
    %c0_i32_1 = arith.constant 0 : i32
    return %c0_i32, %c0_i32_0 : i32, i32
  }
  func.func @transform_16(%arg0: i32) -> (i32, i32) {
    %c0_i32 = arith.constant 0 : i32
    %c0_i32_0 = arith.constant 0 : i32
    %c0_i32_1 = arith.constant 0 : i32
    return %c0_i32, %c0_i32_0 : i32, i32
  }
  func.func @transform_17(%arg0: i32) -> (i32, i32) {
    %c0_i32 = arith.constant 0 : i32
    %c0_i32_0 = arith.constant 0 : i32
    %c0_i32_1 = arith.constant 0 : i32
    return %c0_i32, %c0_i32_0 : i32, i32
  }
  func.func @transform_18(%arg0: i32) -> (i32, i32) {
    %c0_i32 = arith.constant 0 : i32
    %c0_i32_0 = arith.constant 0 : i32
    %c0_i32_1 = arith.constant 0 : i32
    return %c0_i32, %c0_i32_0 : i32, i32
  }
  func.func @transform_19(%arg0: i32) -> (i32, i32) {
    %c0_i32 = arith.constant 0 : i32
    %c0_i32_0 = arith.constant 0 : i32
    %c0_i32_1 = arith.constant 0 : i32
    return %c0_i32, %c0_i32_0 : i32, i32
  }
  func.func @transform_20(%arg0: i32) -> (i32, i32) {
    %c0_i32 = arith.constant 0 : i32
    %c0_i32_0 = arith.constant 0 : i32
    %c0_i32_1 = arith.constant 0 : i32
    return %c0_i32, %c0_i32_0 : i32, i32
  }
  func.func @transform_21(%arg0: i32) -> (i32, i32) {
    %c0_i32 = arith.constant 0 : i32
    %c0_i32_0 = arith.constant 0 : i32
    %c0_i32_1 = arith.constant 0 : i32
    return %c0_i32, %c0_i32_0 : i32, i32
  }
  func.func @transform_22(%arg0: i32) -> (i32, i32, i32) {
    %c0_i32 = arith.constant 0 : i32
    %c0_i32_0 = arith.constant 0 : i32
    %c0_i32_1 = arith.constant 0 : i32
    %c0_i32_2 = arith.constant 0 : i32
    return %c0_i32, %c0_i32_0, %c0_i32_1 : i32, i32, i32
  }
  func.func @transform_23(%arg0: i32) -> (i32, i32) {
    %c0_i32 = arith.constant 0 : i32
    %c0_i32_0 = arith.constant 0 : i32
    %c0_i32_1 = arith.constant 0 : i32
    return %c0_i32, %c0_i32_0 : i32, i32
  }
  func.func @transform_24(%arg0: i32) -> (i32, i32) {
    %c0_i32 = arith.constant 0 : i32
    %c0_i32_0 = arith.constant 0 : i32
    %c0_i32_1 = arith.constant 0 : i32
    return %c0_i32, %c0_i32_0 : i32, i32
  }
}

</mosaic_0001>

<llo_original>
// kernel: tpu_custom_call.1
$region0: #{tpu_custom_call.1}
  #allocation0 [shape = 'u32[]', space=smem, size = 0x4, offset = 0x4, fixed_abs, tag = 'smem constant byte address 0x4 - core index']
  #allocation1 [shape = 'u32[144,128]{1,0:T(1,128)}', space=vmem, size = 0x12000, scoped, tag = 'internal scratch']
  #allocation2 [shape = 'f32[16,4]{1,0:T(8,128)}', space=vmem, size = 0x2000, scoped, tag = 'scratch operand']
  #allocation3 [shape = 'bf16[16,84]{1,0:T(16,128)(2,1)}', space=vmem, size = 0x1000, scoped, tag = 'scratch operand']
  #allocation4 [shape = 'f32[16,2]{1,0:T(8,128)}', space=vmem, size = 0x2000, scoped, tag = 'scratch operand']
  %s0 = inlined_call_operand.vmem [shape: bf16[2,8,256], index: 0, kind: input, shape index: {}]
  %s1 = inlined_call_operand.vmem [shape: bf16[2,16,64], index: 1, kind: input, shape index: {}]
  %s2 = inlined_call_operand.vmem [shape: bf16[2,32,16], index: 2, kind: input, shape index: {}]
  %s3 = inlined_call_operand.vmem [shape: bf16[2,64,4], index: 3, kind: input, shape index: {}]
  %s4 = inlined_call_operand.vmem [shape: bf16[16,8], index: 4, kind: input, shape index: {}]
  %s5 = inlined_call_operand.vmem [shape: bf16[16,16], index: 5, kind: input, shape index: {}]
  %s6 = inlined_call_operand.vmem [shape: bf16[16,32], index: 6, kind: input, shape index: {}]
  %s7 = inlined_call_operand.vmem [shape: bf16[16,64], index: 7, kind: input, shape index: {}]
  %s8 = inlined_call_operand.vmem [shape: f32[16,1], index: 8, kind: input, shape index: {}]
  %s9 = inlined_call_operand.vmem [shape: f32[16,1], index: 9, kind: input, shape index: {}]
  %s10 = inlined_call_operand.vmem [shape: f32[16,1], index: 10, kind: input, shape index: {}]
  %s11 = inlined_call_operand.vmem [shape: f32[16,1], index: 11, kind: input, shape index: {}]
  %s12 = inlined_call_operand.vmem [shape: bf16[84,256], index: 12, kind: input, shape index: {}]
  %s13 = inlined_call_operand.vmem [shape: f32[1,64], index: 13, kind: input, shape index: {}]
  %s14 = inlined_call_operand.vmem [shape: f32[1,16], index: 14, kind: input, shape index: {}]
  %s15 = inlined_call_operand.vmem [shape: f32[1,4], index: 15, kind: input, shape index: {}]
  %s16 = inlined_call_operand.vmem [shape: f32[16,4], index: 16, kind: input, shape index: {}]
  %s17 = inlined_call_operand.vmem [shape: f32[1,4], index: 17, kind: input, shape index: {}]
  %s18 = inlined_call_operand.vmem [shape: f32[128,16], index: 18, kind: input, shape index: {}]
  %s19 = inlined_call_operand.vmem [shape: f32[128,1], index: 19, kind: input, shape index: {}]
  %s20 = inlined_call_operand.vmem [shape: f32[9,128], index: 20, kind: input, shape index: {}]
  %s21 = inlined_call_operand.vmem [shape: f32[9,1], index: 21, kind: input, shape index: {}]
  %s22 = inlined_call_operand.hbm [shape: f32[2,16,256], index: 22, kind: output, shape index: {0}]
  %s23 = inlined_call_operand.hbm [shape: f32[2,4], index: 23, kind: output, shape index: {1}]
  %s24 = inlined_call_operand.vmem [shape: f32[9,2], index: 24, kind: output, shape index: {2}]
  %25 = xla_tuple %s22, %s23, %s24
  %s26 = sld [smem:[#allocation0]]
  $region114: #{tpu_custom_call.1} parent=0
    _
  %s28 = ssub.s32 1, %s26
  %s29 = scalar_select 0, %s28, %s26
  $region1: #{tpu_custom_call.1} parent=0
    #allocation5 [shape = 'u8[32768]{0}', space=vmem, size = 0x8000, scoped, tag = 'output window, operand 0, single buffered']
    #allocation6 [shape = 's32[1]{0}', space=sflag, size = 0x4, scoped, tag = 'scoped memory for tpu_custom_call.1']
    #allocation7 [shape = 'u8[1024]{0}', space=vmem, size = 0x400, scoped, tag = 'output window, operand 1, single buffered']
    #allocation8 [shape = 's32[1]{0}', space=sflag, size = 0x4, scoped, tag = 'scoped memory for tpu_custom_call.1']
    %30 = vsyncpa [#allocation6], 0
    %31 = vsyncpa [#allocation8], 0
    // Predicated region
    $region2: #{tpu_custom_call.1} parent=1 // pred_check
      _
    $region3: #{tpu_custom_call.1} parent=1 // pred_check_branch
      %33 = sbr.rel (0) target = $region5
    $region4: #{tpu_custom_call.1} parent=1 // pred_region
      _
    $region5: #{tpu_custom_call.1} parent=1 // pred_fallthru
      _
    // Predicated region
    $region6: #{tpu_custom_call.1} parent=1 // pred_check
      _
    $region7: #{tpu_custom_call.1} parent=1 // pred_check_branch
      %35 = sbr.rel (0) target = $region9
    $region8: #{tpu_custom_call.1} parent=1 // pred_region
      _
    $region9: #{tpu_custom_call.1} parent=1 // pred_fallthru
      _
    // Predicated region
    $region10: #{tpu_custom_call.1} parent=1 // pred_check
      _
    $region11: #{tpu_custom_call.1} parent=1 // pred_check_branch
      %37 = sbr.rel (0) target = $region13
    $region12: #{tpu_custom_call.1} parent=1 // pred_region
      _
    $region13: #{tpu_custom_call.1} parent=1 // pred_fallthru
      _
    // Predicated region
    $region14: #{tpu_custom_call.1} parent=1 // pred_check
      _
    $region15: #{tpu_custom_call.1} parent=1 // pred_check_branch
      %39 = sbr.rel (0) target = $region17
    $region16: #{tpu_custom_call.1} parent=1 // pred_region
      _
    $region17: #{tpu_custom_call.1} parent=1 // pred_fallthru
      _
    // Predicated region
    $region18: #{tpu_custom_call.1} parent=1 // pred_check
      _
    $region19: #{tpu_custom_call.1} parent=1 // pred_check_branch
      %41 = sbr.rel (0) target = $region21
    $region20: #{tpu_custom_call.1} parent=1 // pred_region
      _
    $region21: #{tpu_custom_call.1} parent=1 // pred_fallthru
      _
    // Predicated region
    $region22: #{tpu_custom_call.1} parent=1 // pred_check
      _
    $region23: #{tpu_custom_call.1} parent=1 // pred_check_branch
      %43 = sbr.rel (0) target = $region25
    $region24: #{tpu_custom_call.1} parent=1 // pred_region
      _
    $region25: #{tpu_custom_call.1} parent=1 // pred_fallthru
      _
    // Predicated region
    $region26: #{tpu_custom_call.1} parent=1 // pred_check
      _
    $region27: #{tpu_custom_call.1} parent=1 // pred_check_branch
      %45 = sbr.rel (0) target = $region29
    $region28: #{tpu_custom_call.1} parent=1 // pred_region
      _
    $region29: #{tpu_custom_call.1} parent=1 // pred_fallthru
      _
    // Predicated region
    $region30: #{tpu_custom_call.1} parent=1 // pred_check
      _
    $region31: #{tpu_custom_call.1} parent=1 // pred_check_branch
      %47 = sbr.rel (0) target = $region33
    $region32: #{tpu_custom_call.1} parent=1 // pred_region
      _
    $region33: #{tpu_custom_call.1} parent=1 // pred_fallthru
      _
    // Predicated region
    $region34: #{tpu_custom_call.1} parent=1 // pred_check
      _
    $region35: #{tpu_custom_call.1} parent=1 // pred_check_branch
      %49 = sbr.rel (0) target = $region37
    $region36: #{tpu_custom_call.1} parent=1 // pred_region
      _
    $region37: #{tpu_custom_call.1} parent=1 // pred_fallthru
      _
    // Predicated region
    $region38: #{tpu_custom_call.1} parent=1 // pred_check
      _
    $region39: #{tpu_custom_call.1} parent=1 // pred_check_branch
      %51 = sbr.rel (0) target = $region41
    $region40: #{tpu_custom_call.1} parent=1 // pred_region
      _
    $region41: #{tpu_custom_call.1} parent=1 // pred_fallthru
      _
    // Predicated region
    $region42: #{tpu_custom_call.1} parent=1 // pred_check
      _
    $region43: #{tpu_custom_call.1} parent=1 // pred_check_branch
      %53 = sbr.rel (0) target = $region45
    $region44: #{tpu_custom_call.1} parent=1 // pred_region
      _
    $region45: #{tpu_custom_call.1} parent=1 // pred_fallthru
      _
    // Predicated region
    $region46: #{tpu_custom_call.1} parent=1 // pred_check
      _
    $region47: #{tpu_custom_call.1} parent=1 // pred_check_branch
      %55 = sbr.rel (0) target = $region49
    $region48: #{tpu_custom_call.1} parent=1 // pred_region
      _
    $region49: #{tpu_custom_call.1} parent=1 // pred_fallthru
      _
    // Predicated region
    $region50: #{tpu_custom_call.1} parent=1 // pred_check
      _
    $region51: #{tpu_custom_call.1} parent=1 // pred_check_branch
      %57 = sbr.rel (0) target = $region53
    $region52: #{tpu_custom_call.1} parent=1 // pred_region
      _
    $region53: #{tpu_custom_call.1} parent=1 // pred_fallthru
      _
    // Predicated region
    $region54: #{tpu_custom_call.1} parent=1 // pred_check
      _
    $region55: #{tpu_custom_call.1} parent=1 // pred_check_branch
      %59 = sbr.rel (0) target = $region57
    $region56: #{tpu_custom_call.1} parent=1 // pred_region
      _
    $region57: #{tpu_custom_call.1} parent=1 // pred_fallthru
      _
    // Predicated region
    $region58: #{tpu_custom_call.1} parent=1 // pred_check
      _
    $region59: #{tpu_custom_call.1} parent=1 // pred_check_branch
      %61 = sbr.rel (0) target = $region61
    $region60: #{tpu_custom_call.1} parent=1 // pred_region
      _
    $region61: #{tpu_custom_call.1} parent=1 // pred_fallthru
      _
    // Predicated region
    $region62: #{tpu_custom_call.1} parent=1 // pred_check
      _
    $region63: #{tpu_custom_call.1} parent=1 // pred_check_branch
      %63 = sbr.rel (0) target = $region65
    $region64: #{tpu_custom_call.1} parent=1 // pred_region
      _
    $region65: #{tpu_custom_call.1} parent=1 // pred_fallthru
      _
    // Predicated region
    $region66: #{tpu_custom_call.1} parent=1 // pred_check
      _
    $region67: #{tpu_custom_call.1} parent=1 // pred_check_branch
      %65 = sbr.rel (0) target = $region69
    $region68: #{tpu_custom_call.1} parent=1 // pred_region
      _
    $region69: #{tpu_custom_call.1} parent=1 // pred_fallthru
      _
    // Predicated region
    $region70: #{tpu_custom_call.1} parent=1 // pred_check
      _
    $region71: #{tpu_custom_call.1} parent=1 // pred_check_branch
      %67 = sbr.rel (0) target = $region73
    $region72: #{tpu_custom_call.1} parent=1 // pred_region
      _
    $region73: #{tpu_custom_call.1} parent=1 // pred_fallthru
      _
    // Predicated region
    $region74: #{tpu_custom_call.1} parent=1 // pred_check
      _
    $region75: #{tpu_custom_call.1} parent=1 // pred_check_branch
      %69 = sbr.rel (0) target = $region77
    $region76: #{tpu_custom_call.1} parent=1 // pred_region
      _
    $region77: #{tpu_custom_call.1} parent=1 // pred_fallthru
      _
    // Predicated region
    $region78: #{tpu_custom_call.1} parent=1 // pred_check
      _
    $region79: #{tpu_custom_call.1} parent=1 // pred_check_branch
      %71 = sbr.rel (0) target = $region81
    $region80: #{tpu_custom_call.1} parent=1 // pred_region
      _
    $region81: #{tpu_custom_call.1} parent=1 // pred_fallthru
      _
    // Predicated region
    $region82: #{tpu_custom_call.1} parent=1 // pred_check
      _
    $region83: #{tpu_custom_call.1} parent=1 // pred_check_branch
      %73 = sbr.rel (0) target = $region85
    $region84: #{tpu_custom_call.1} parent=1 // pred_region
      _
    $region85: #{tpu_custom_call.1} parent=1 // pred_fallthru
      _
    // Predicated region
    $region86: #{tpu_custom_call.1} parent=1 // pred_check
      _
    $region87: #{tpu_custom_call.1} parent=1 // pred_check_branch
      %75 = sbr.rel (0) target = $region89
    $region88: #{tpu_custom_call.1} parent=1 // pred_region
      _
    $region89: #{tpu_custom_call.1} parent=1 // pred_fallthru
      _
    %v77 = vld [vmem:[%s16] sm:$0xff]
    %v78 = vld [vmem:[%s16 + $0x8] sm:$0xff]
    %v79 = vld [vmem:[%s17] sm:$0x1]
    %v80 = vld [vmem:[%s12] sm:$0xff]
    %v81 = vld [vmem:[%s12 + $0x8] sm:$0xff]
    %v82 = vld [vmem:[%s12 + $0x10] sm:$0xff]
    %v83 = vld [vmem:[%s12 + $0x18] sm:$0xff]
    %v84 = vld [vmem:[%s12 + $0x20] sm:$0xff]
    %v85 = vld [vmem:[%s12 + $0x28] sm:$0xff]
    %v86 = vld [vmem:[%s12 + $0x30] sm:$0xff]
    %v87 = vld [vmem:[%s12 + $0x38] sm:$0xff]
    %v88 = vld [vmem:[%s12 + $0x40] sm:$0xff]
    %v89 = vld [vmem:[%s12 + $0x48] sm:$0xff]
    %v90 = vld [vmem:[%s12 + $0x50] sm:$0x33]
    %v91 = vld [vmem:[%s13] sm:$0x1]
    %v92 = vld [vmem:[%s14] sm:$0x1]
    %v93 = vld [vmem:[%s15] sm:$0x1]
    %v94 = vld [vmem:[%s4] sm:$0xf]
    %v95 = vld [vmem:[%s4 + $0x4] sm:$0xf]
    %v96 = vld [vmem:[%s0] sm:$0xff]
    %v97 = vld [vmem:[%s8] sm:$0xff]
    %v98 = vld [vmem:[%s8 + $0x8] sm:$0xff]
    %100 = vset.pattern.permute.xlu0 0
    %101 = vperm.xlu0 %100, %v97
    %v102 = vpop.permute.xlu0 %101
    %105 = vset.pattern.permute.xlu0 0
    %106 = vperm.xlu0 %105, %v98
    %v107 = vpop.permute.xlu0 %106
    %v111 = vunpack.c.l.b16 %v94
    %v112 = vunpack.c.l.b16 %v95
    %v113 = vpack.c.b16 %v112, %v111
    %v115 = vunpack.c.l.b16 %v96
    %v116 = vunpack.c.h.b16 %v96
    %v117 = vpack.c.b16 %v115, %v115
    %v118 = vpack.c.b16 %v116, %v116
    %vm119 = vcmask 64512
    %v121 = vsel %vm119, %v113, 0
    %vm123 = vcmask 1043456
    %v125 = vsel %vm123, %v117, 0
    %v128 = vsel %vm123, %v118, 0
    %130 = vmatprep.subr.bf16.mxu0 %v128
    %131 = vmatpush1.bf16.msra.mxu0 %v125
    %132 = vmatprep.subr.bf16.mxu0 0
    %133 = vmatpush1.bf16.msra.mxu0 0
    %134 = vmatprep.subr.bf16.mxu0 0
    %135 = vmatpush1.bf16.msra.mxu0 0
    %136 = vmatprep.subr.bf16.mxu0 0
    %137 = vmatpush1.bf16.msra.mxu0 0
    %138 = vmatprep.subr.bf16.mxu0 0
    %139 = vmatpush1.bf16.msra.mxu0 0
    %140 = vmatprep.subr.bf16.mxu0 0
    %141 = vmatpush1.bf16.msra.mxu0 0
    %142 = vmatprep.subr.bf16.mxu0 0
    %143 = vmatpush1.bf16.msra.mxu0 0
    %144 = vmatprep.subr.bf16.mxu0 0
    %145 = vmatpush1.bf16.msra.mxu0 0
    %146 = vmatprep.subr.bf16.mxu0 0
    %147 = vmatpush1.bf16.msra.mxu0 0
    %148 = vmatprep.subr.bf16.mxu0 0
    %149 = vmatpush1.bf16.msra.mxu0 0
    %150 = vmatprep.subr.bf16.mxu0 0
    %151 = vmatpush1.bf16.msra.mxu0 0
    %152 = vmatprep.subr.bf16.mxu0 0
    %153 = vmatpush1.bf16.msra.mxu0 0
    %154 = vmatprep.subr.bf16.mxu0 0
    %155 = vmatpush1.bf16.msra.mxu0 0
    %156 = vmatprep.subr.bf16.mxu0 0
    %157 = vmatpush1.bf16.msra.mxu0 0
    %158 = vmatprep.subr.bf16.mxu0 0
    %159 = vmatpush1.bf16.msra.mxu0 0
    %160 = vmatprep.subr.bf16.mxu0 0
    %161 = vmatpush1.bf16.msra.mxu0 0
    %162 = vmatprep.mubr.bf16.mxu0 0
    %163 = vmatmul.mubr.bf16.gmra.mrb[0].mxu0 %v121
    %v164 = vpop.f32.mrb[0].mxu0
    %v165 = vadd.f32 %v102, %v164
    %v166 = vpop.f32.mrb[0].mxu0
    %v167 = vadd.f32 %v102, %v166
    %v168 = vpop.f32.mrb[0].mxu0
    %v169 = vadd.f32 %v107, %v168
    %v170 = vpop.f32.mrb[0].mxu0
    %v171 = vadd.f32 %v107, %v170
    %172 = vdwg.mxu0
    %v173 = vmax.f32 %v165, 0.0
    %v174 = vmax.f32 %v167, 0.0
    %v175 = vmax.f32 %v169, 0.0
    %v176 = vmax.f32 %v171, 0.0
    %v177 = vld [vmem:[%s5] sm:$0xf]
    %v178 = vld [vmem:[%s5 + $0x4] sm:$0xf]
    %v179 = vld [vmem:[%s1] sm:$0xf]
    %v180 = vld [vmem:[%s1 + $0x4] sm:$0xf]
    %v181 = vld [vmem:[%s9] sm:$0xff]
    %v182 = vld [vmem:[%s9 + $0x8] sm:$0xff]
    %184 = vset.pattern.permute.xlu0 0
    %185 = vperm.xlu0 %184, %v181
    %v186 = vpop.permute.xlu0 %185
    %189 = vset.pattern.permute.xlu0 0
    %190 = vperm.xlu0 %189, %v182
    %v191 = vpop.permute.xlu0 %190
    %v195 = vunpack.c.l.b16 %v177
    %v196 = vunpack.c.l.b16 %v178
    %v197 = vpack.c.b16 %v196, %v195
    %v200 = vunpack.c.l.b16 %v179
    %v201 = vunpack.c.l.b16 %v180
    %v202 = vpack.c.b16 %v201, %v200
    %vm204 = vcmask 130048
    %v206 = vsel %vm204, %v197, 0
    %208 = vmatprep.subr.bf16.mxu0 0
    %209 = vmatpush1.bf16.msra.mxu0 %v202
    %210 = vmatprep.subr.bf16.mxu0 0
    %211 = vmatpush1.bf16.msra.mxu0 0
    %212 = vmatprep.subr.bf16.mxu0 0
    %213 = vmatpush1.bf16.msra.mxu0 0
    %214 = vmatprep.subr.bf16.mxu0 0
    %215 = vmatpush1.bf16.msra.mxu0 0
    %216 = vmatprep.subr.bf16.mxu0 0
    %217 = vmatpush1.bf16.msra.mxu0 0
    %218 = vmatprep.subr.bf16.mxu0 0
    %219 = vmatpush1.bf16.msra.mxu0 0
    %220 = vmatprep.subr.bf16.mxu0 0
    %221 = vmatpush1.bf16.msra.mxu0 0
    %222 = vmatprep.subr.bf16.mxu0 0
    %223 = vmatpush1.bf16.msra.mxu0 0
    %224 = vmatprep.subr.bf16.mxu0 0
    %225 = vmatpush1.bf16.msra.mxu0 0
    %226 = vmatprep.subr.bf16.mxu0 0
    %227 = vmatpush1.bf16.msra.mxu0 0
    %228 = vmatprep.subr.bf16.mxu0 0
    %229 = vmatpush1.bf16.msra.mxu0 0
    %230 = vmatprep.subr.bf16.mxu0 0
    %231 = vmatpush1.bf16.msra.mxu0 0
    %232 = vmatprep.subr.bf16.mxu0 0
    %233 = vmatpush1.bf16.msra.mxu0 0
    %234 = vmatprep.subr.bf16.mxu0 0
    %235 = vmatpush1.bf16.msra.mxu0 0
    %236 = vmatprep.subr.bf16.mxu0 0
    %237 = vmatpush1.bf16.msra.mxu0 0
    %238 = vmatprep.subr.bf16.mxu0 0
    %239 = vmatpush1.bf16.msra.mxu0 0
    %240 = vmatprep.mubr.bf16.mxu0 0
    %241 = vmatmul.mubr.bf16.gmra.mrb[0].mxu0 %v206
    %v242 = vpop.f32.mrb[0].mxu0
    %v243 = vadd.f32 %v186, %v242
    %v244 = vpop.f32.mrb[0].mxu0
    %v245 = vpop.f32.mrb[0].mxu0
    %v246 = vadd.f32 %v191, %v245
    %v247 = vpop.f32.mrb[0].mxu0
    %248 = vdwg.mxu0
    %v249 = vmax.f32 %v243, 0.0
    %v250 = vmax.f32 %v246, 0.0
    %v251 = vld [vmem:[%s6] sm:$0xf]
    %v252 = vld [vmem:[%s6 + $0x4] sm:$0xf]
    %v253 = vld [vmem:[%s2] sm:$0xf]
    %v254 = vld [vmem:[%s2 + $0x4] sm:$0xf]
    %v255 = vld [vmem:[%s2 + $0x8] sm:$0xf]
    %v256 = vld [vmem:[%s2 + $0xc] sm:$0xf]
    %v257 = vld [vmem:[%s10] sm:$0xff]
    %v258 = vld [vmem:[%s10 + $0x8] sm:$0xff]
    %260 = vset.pattern.permute.xlu0 0
    %261 = vperm.xlu0 %260, %v257
    %v262 = vpop.permute.xlu0 %261
    %265 = vset.pattern.permute.xlu0 0
    %266 = vperm.xlu0 %265, %v258
    %v267 = vpop.permute.xlu0 %266
    %v271 = vunpack.c.l.b16 %v251
    %v272 = vunpack.c.l.b16 %v252
    %v273 = vpack.c.b16 %v272, %v271
    %v278 = vunpack.c.l.b16 %v253
    %v279 = vunpack.c.l.b16 %v254
    %v280 = vunpack.c.l.b16 %v255
    %v281 = vunpack.c.l.b16 %v256
    %v282 = vpack.c.b16 %v279, %v278
    %v283 = vpack.c.b16 %v281, %v280
    %vm286 = vcmask 261120
    %v288 = vsel %vm286, %v273, 0
    %290 = vmatprep.subr.bf16.mxu0 0
    %291 = vmatpush1.bf16.msra.mxu0 %v282
    %292 = vmatprep.subr.bf16.mxu0 0
    %293 = vmatpush1.bf16.msra.mxu0 %v283
    %294 = vmatprep.subr.bf16.mxu0 0
    %295 = vmatpush1.bf16.msra.mxu0 0
    %296 = vmatprep.subr.bf16.mxu0 0
    %297 = vmatpush1.bf16.msra.mxu0 0
    %298 = vmatprep.subr.bf16.mxu0 0
    %299 = vmatpush1.bf16.msra.mxu0 0
    %300 = vmatprep.subr.bf16.mxu0 0
    %301 = vmatpush1.bf16.msra.mxu0 0
    %302 = vmatprep.subr.bf16.mxu0 0
    %303 = vmatpush1.bf16.msra.mxu0 0
    %304 = vmatprep.subr.bf16.mxu0 0
    %305 = vmatpush1.bf16.msra.mxu0 0
    %306 = vmatprep.subr.bf16.mxu0 0
    %307 = vmatpush1.bf16.msra.mxu0 0
    %308 = vmatprep.subr.bf16.mxu0 0
    %309 = vmatpush1.bf16.msra.mxu0 0
    %310 = vmatprep.subr.bf16.mxu0 0
    %311 = vmatpush1.bf16.msra.mxu0 0
    %312 = vmatprep.subr.bf16.mxu0 0
    %313 = vmatpush1.bf16.msra.mxu0 0
    %314 = vmatprep.subr.bf16.mxu0 0
    %315 = vmatpush1.bf16.msra.mxu0 0
    %316 = vmatprep.subr.bf16.mxu0 0
    %317 = vmatpush1.bf16.msra.mxu0 0
    %318 = vmatprep.subr.bf16.mxu0 0
    %319 = vmatpush1.bf16.msra.mxu0 0
    %320 = vmatprep.subr.bf16.mxu0 0
    %321 = vmatpush1.bf16.msra.mxu0 0
    %322 = vmatprep.mubr.bf16.mxu0 0
    %323 = vmatmul.mubr.bf16.gmra.mrb[0].mxu0 %v288
    %v324 = vpop.f32.mrb[0].mxu0
    %v325 = vadd.f32 %v262, %v324
    %v326 = vpop.f32.mrb[0].mxu0
    %v327 = vpop.f32.mrb[0].mxu0
    %v328 = vadd.f32 %v267, %v327
    %v329 = vpop.f32.mrb[0].mxu0
    %330 = vdwg.mxu0
    %v331 = vmax.f32 %v325, 0.0
    %v332 = vmax.f32 %v328, 0.0
    %v333 = vld [vmem:[%s7] sm:$0xf]
    %v334 = vld [vmem:[%s7 + $0x4] sm:$0xf]
    %v335 = vld [vmem:[%s3] sm:$0xf]
    %v336 = vld [vmem:[%s3 + $0x4] sm:$0xf]
    %v337 = vld [vmem:[%s3 + $0x8] sm:$0xf]
    %v338 = vld [vmem:[%s3 + $0xc] sm:$0xf]
    %v339 = vld [vmem:[%s3 + $0x10] sm:$0xf]
    %v340 = vld [vmem:[%s3 + $0x14] sm:$0xf]
    %v341 = vld [vmem:[%s3 + $0x18] sm:$0xf]
    %v342 = vld [vmem:[%s3 + $0x1c] sm:$0xf]
    %v343 = vld [vmem:[%s11] sm:$0xff]
    %v344 = vld [vmem:[%s11 + $0x8] sm:$0xff]
    %346 = vset.pattern.permute.xlu0 0
    %347 = vperm.xlu0 %346, %v343
    %v348 = vpop.permute.xlu0 %347
    %351 = vset.pattern.permute.xlu0 0
    %352 = vperm.xlu0 %351, %v344
    %v353 = vpop.permute.xlu0 %352
    %v357 = vunpack.c.l.b16 %v333
    %v358 = vunpack.c.l.b16 %v334
    %v359 = vpack.c.b16 %v358, %v357
    %v368 = vunpack.c.l.b16 %v335
    %v369 = vunpack.c.l.b16 %v336
    %v370 = vunpack.c.l.b16 %v337
    %v371 = vunpack.c.l.b16 %v338
    %v372 = vunpack.c.l.b16 %v339
    %v373 = vunpack.c.l.b16 %v340
    %v374 = vunpack.c.l.b16 %v341
    %v375 = vunpack.c.l.b16 %v342
    %v376 = vpack.c.b16 %v369, %v368
    %v377 = vpack.c.b16 %v371, %v370
    %v378 = vpack.c.b16 %v373, %v372
    %v379 = vpack.c.b16 %v375, %v374
    %vm384 = vcmask 523264
    %v386 = vsel %vm384, %v359, 0
    %388 = vmatprep.subr.bf16.mxu0 0
    %389 = vmatpush1.bf16.msra.mxu0 %v376
    %390 = vmatprep.subr.bf16.mxu0 0
    %391 = vmatpush1.bf16.msra.mxu0 %v377
    %392 = vmatprep.subr.bf16.mxu0 0
    %393 = vmatpush1.bf16.msra.mxu0 %v378
    %394 = vmatprep.subr.bf16.mxu0 0
    %395 = vmatpush1.bf16.msra.mxu0 %v379
    %396 = vmatprep.subr.bf16.mxu0 0
    %397 = vmatpush1.bf16.msra.mxu0 0
    %398 = vmatprep.subr.bf16.mxu0 0
    %399 = vmatpush1.bf16.msra.mxu0 0
    %400 = vmatprep.subr.bf16.mxu0 0
    %401 = vmatpush1.bf16.msra.mxu0 0
    %402 = vmatprep.subr.bf16.mxu0 0
    %403 = vmatpush1.bf16.msra.mxu0 0
    %404 = vmatprep.subr.bf16.mxu0 0
    %405 = vmatpush1.bf16.msra.mxu0 0
    %406 = vmatprep.subr.bf16.mxu0 0
    %407 = vmatpush1.bf16.msra.mxu0 0
    %408 = vmatprep.subr.bf16.mxu0 0
    %409 = vmatpush1.bf16.msra.mxu0 0
    %410 = vmatprep.subr.bf16.mxu0 0
    %411 = vmatpush1.bf16.msra.mxu0 0
    %412 = vmatprep.subr.bf16.mxu0 0
    %413 = vmatpush1.bf16.msra.mxu0 0
    %414 = vmatprep.subr.bf16.mxu0 0
    %415 = vmatpush1.bf16.msra.mxu0 0
    %416 = vmatprep.subr.bf16.mxu0 0
    %417 = vmatpush1.bf16.msra.mxu0 0
    %418 = vmatprep.subr.bf16.mxu0 0
    %419 = vmatpush1.bf16.msra.mxu0 0
    %420 = vmatprep.mubr.bf16.mxu0 0
    %421 = vmatmul.mubr.bf16.gmra.mrb[0].mxu0 %v386
    %v422 = vpop.f32.mrb[0].mxu0
    %v423 = vadd.f32 %v348, %v422
    %v424 = vpop.f32.mrb[0].mxu0
    %v425 = vpop.f32.mrb[0].mxu0
    %v426 = vadd.f32 %v353, %v425
    %v427 = vpop.f32.mrb[0].mxu0
    %428 = vdwg.mxu0
    %v429 = vmax.f32 %v423, 0.0
    %v430 = vmax.f32 %v426, 0.0
    %v431 = vadd.f32 %v173, %v174
    %432 = vadd.xlane.f32.xlu0 %v431
    %v433 = vpop.xlane.xlu0 %432
    %v434 = vadd.f32 %v175, %v176
    %435 = vadd.xlane.f32.xlu0 %v434
    %v436 = vpop.xlane.xlu0 %435
    %v437 = vmul.f32 %v433, 0.00390625
    %v438 = vmul.f32 %v436, 0.00390625
    %vm439 = vcmask 7168
    %440 = vst.msk [vmem:[#allocation2] sm:$0xff] %vm439, %v437
    %441 = vst.msk [vmem:[#allocation2 + $0x8] sm:$0xff] %vm439, %v438
    %v443 = vlaneseq
    %v444 = vshrl.u32 %v443, 7
    %v445 = vsub.s32 0, %v444
    %v446 = vrot.slane %v91, %v445
    %v448 = vmul.f32 %v249, %v446
    %v449 = vmul.f32 %v250, %v446
    %v450 = vsel %vm384, %v448, 0.0
    %451 = vadd.xlane.f32.xlu0 %v450
    %v452 = vpop.xlane.xlu0 %451
    %v453 = vsel %vm384, %v449, 0.0
    %454 = vadd.xlane.f32.xlu0 %v453
    %v455 = vpop.xlane.xlu0 %454
    %vm456 = vcmask 15368
    %457 = vst.msk [vmem:[#allocation2] sm:$0xff] %vm456, %v452
    %458 = vst.msk [vmem:[#allocation2 + $0x8] sm:$0xff] %vm456, %v455
    %v460 = vlaneseq
    %v461 = vshrl.u32 %v460, 7
    %v462 = vsub.s32 0, %v461
    %v463 = vrot.slane %v92, %v462
    %v465 = vmul.f32 %v331, %v463
    %v466 = vmul.f32 %v332, %v463
    %v467 = vsel %vm204, %v465, 0.0
    %468 = vadd.xlane.f32.xlu0 %v467
    %v469 = vpop.xlane.xlu0 %468
    %v470 = vsel %vm204, %v466, 0.0
    %471 = vadd.xlane.f32.xlu0 %v470
    %v472 = vpop.xlane.xlu0 %471
    %vm473 = vcmask 23568
    %474 = vst.msk [vmem:[#allocation2] sm:$0xff] %vm473, %v469
    %475 = vst.msk [vmem:[#allocation2 + $0x8] sm:$0xff] %vm473, %v472
    %v477 = vlaneseq
    %v478 = vshrl.u32 %v477, 7
    %v479 = vsub.s32 0, %v478
    %v480 = vrot.slane %v93, %v479
    %v482 = vmul.f32 %v429, %v480
    %v483 = vmul.f32 %v430, %v480
    %vm484 = vcmask 31744
    %v485 = vsel %vm484, %v482, 0.0
    %486 = vadd.xlane.f32.xlu0 %v485
    %v487 = vpop.xlane.xlu0 %486
    %v488 = vsel %vm484, %v483, 0.0
    %489 = vadd.xlane.f32.xlu0 %v488
    %v490 = vpop.xlane.xlu0 %489
    %vm491 = vcmask 31768
    %492 = vst.msk [vmem:[#allocation2] sm:$0xff] %vm491, %v487
    %493 = vst.msk [vmem:[#allocation2 + $0x8] sm:$0xff] %vm491, %v490
    %v494 = vld [vmem:[#allocation2] sm:$0xff]
    %v495 = vld [vmem:[#allocation2 + $0x8] sm:$0xff]
    %v496 = vmul.f32 %v77, %v494
    %v497 = vmul.f32 %v78, %v495
    %v498 = vsel %vm484, %v496, 0.0
    %v499 = vsel %vm484, %v497, 0.0
    %v500 = vadd.f32 %v498, %v499
    %v501 = vrot.slane %v500, 4
    %v502 = vadd.f32 %v500, %v501
    %v503 = vrot.slane %v502, 2
    %v504 = vadd.f32 %v502, %v503
    %v505 = vrot.slane %v504, 1
    %v506 = vadd.f32 %v504, %v505
    %v507 = vadd.f32 %v506, %v79
    %v508 = vxor.u32 %v507, 2147483648
    %v509 = vmul.f32 %v508, 1.442695
    %v510 = vpow.pop %v509
    %v511 = vadd.f32 %v510, 1.0
    %v512 = vrcp.pop %v511
    %v513 = vmul.f32 1.0, %v512
    %vm514 = vcmask 24576
    %v515 = vsel %vm514, %v513, -inf
    %516 = vmax.xlane.f32.xlu0 %v515
    %v517 = vpop.xlane.xlu0 %516
    %v518 = vsub.f32 %v513, %v517
    %v519 = vmul.f32 %v518, 1.442695
    %v520 = vpow.pop %v519
    %v521 = vsel %vm514, %v520, 0.0
    %522 = vadd.xlane.f32.xlu0 %v521
    %v523 = vpop.xlane.xlu0 %522
    %v524 = vrcp.pop %v523
    %v525 = vmul.f32 %v520, %v524
    %527 = vrot.lane.b32.xlu0 %v525, 127
    %v528 = vpop.permute.xlu0 %527
    %s529 = vtos %v528
    %v530 = vstv %s529
    %v532 = vmul.f32 %v249, %v530
    %v533 = vmul.f32 %v250, %v530
    %v534 = vpack.c.bf16 %v533, %v532
    %535 = vst.msk [vmem:[#allocation3] sm:$0xff] %vm384, %v534
    %536 = vrot.lane.b32.xlu0 %v525, 126
    %v537 = vpop.permute.xlu0 %536
    %s538 = vtos %v537
    %v539 = vstv %s538
    %v541 = vmul.f32 %v331, %v539
    %v542 = vmul.f32 %v332, %v539
    %v543 = vpack.c.bf16 %v542, %v541
    %545 = vrot.lane.b32.xlu0 %v543, 64
    %v546 = vpop.permute.xlu0 %545
    %vm548 = vcmask 654848
    %549 = vst.msk [vmem:[#allocation3] sm:$0xff] %vm548, %v546
    %550 = vrot.lane.b32.xlu0 %v525, 125
    %v551 = vpop.permute.xlu0 %550
    %s552 = vtos %v551
    %v553 = vstv %s552
    %v555 = vmul.f32 %v429, %v553
    %v556 = vmul.f32 %v430, %v553
    %v557 = vpack.c.bf16 %v556, %v555
    %559 = vrot.lane.b32.xlu0 %v557, 80
    %v560 = vpop.permute.xlu0 %559
    %vm562 = vcmask 687744
    %563 = vst.msk [vmem:[#allocation3] sm:$0xff] %vm562, %v560
    %s564 = vtos %v525
    %v565 = vstv %s564
    %v567 = vmul.f32 %v173, %v565
    %v568 = vmul.f32 %v174, %v565
    %v569 = vmul.f32 %v175, %v565
    %v570 = vmul.f32 %v176, %v565
    %v571 = vld [vmem:[#allocation3] sm:$0xff]
    %v583 = vunpack.c.l.b16 %v80
    %v584 = vunpack.c.h.b16 %v80
    %v585 = vunpack.c.l.b16 %v81
    %v586 = vunpack.c.h.b16 %v81
    %v587 = vunpack.c.l.b16 %v82
    %v588 = vunpack.c.h.b16 %v82
    %v589 = vunpack.c.l.b16 %v83
    %v590 = vunpack.c.h.b16 %v83
    %v591 = vunpack.c.l.b16 %v84
    %v592 = vunpack.c.h.b16 %v84
    %v593 = vunpack.c.l.b16 %v85
    %v594 = vunpack.c.h.b16 %v85
    %v595 = vunpack.c.l.b16 %v86
    %v596 = vunpack.c.h.b16 %v86
    %v597 = vunpack.c.l.b16 %v87
    %v598 = vunpack.c.h.b16 %v87
    %v599 = vunpack.c.l.b16 %v88
    %v600 = vunpack.c.h.b16 %v88
    %v601 = vunpack.c.l.b16 %v89
    %v602 = vunpack.c.h.b16 %v89
    %v603 = vunpack.c.l.b16 %v90
    %v604 = vunpack.c.h.b16 %v90
    %v605 = vpack.c.b16 %v585, %v583
    %v606 = vpack.c.b16 %v586, %v584
    %v607 = vpack.c.b16 %v589, %v587
    %v608 = vpack.c.b16 %v590, %v588
    %v609 = vpack.c.b16 %v593, %v591
    %v610 = vpack.c.b16 %v594, %v592
    %v611 = vpack.c.b16 %v597, %v595
    %v612 = vpack.c.b16 %v598, %v596
    %v613 = vpack.c.b16 %v601, %v599
    %v614 = vpack.c.b16 %v602, %v600
    %v615 = vpack.c.b16 %v603, %v603
    %v616 = vpack.c.b16 %v604, %v604
    %vm627 = vcmask 687104
    %v629 = vsel %vm627, %v571, 0
    %vm631 = vcmask 1041408
    %v633 = vsel %vm631, %v615, 0
    %v636 = vsel %vm631, %v616, 0
    %638 = vmatprep.subr.bf16.mxu0 %v606
    %639 = vmatpush1.bf16.msra.mxu0 %v605
    %640 = vmatprep.subr.bf16.mxu0 %v608
    %641 = vmatpush1.bf16.msra.mxu0 %v607
    %642 = vmatprep.subr.bf16.mxu0 %v610
    %643 = vmatpush1.bf16.msra.mxu0 %v609
    %644 = vmatprep.subr.bf16.mxu0 %v612
    %645 = vmatpush1.bf16.msra.mxu0 %v611
    %646 = vmatprep.subr.bf16.mxu0 %v614
    %647 = vmatpush1.bf16.msra.mxu0 %v613
    %648 = vmatprep.subr.bf16.mxu0 %v636
    %649 = vmatpush1.bf16.msra.mxu0 %v633
    %650 = vmatprep.subr.bf16.mxu0 0
    %651 = vmatpush1.bf16.msra.mxu0 0
    %652 = vmatprep.subr.bf16.mxu0 0
    %653 = vmatpush1.bf16.msra.mxu0 0
    %654 = vmatprep.subr.bf16.mxu0 0
    %655 = vmatpush1.bf16.msra.mxu0 0
    %656 = vmatprep.subr.bf16.mxu0 0
    %657 = vmatpush1.bf16.msra.mxu0 0
    %658 = vmatprep.subr.bf16.mxu0 0
    %659 = vmatpush1.bf16.msra.mxu0 0
    %660 = vmatprep.subr.bf16.mxu0 0
    %661 = vmatpush1.bf16.msra.mxu0 0
    %662 = vmatprep.subr.bf16.mxu0 0
    %663 = vmatpush1.bf16.msra.mxu0 0
    %664 = vmatprep.subr.bf16.mxu0 0
    %665 = vmatpush1.bf16.msra.mxu0 0
    %666 = vmatprep.subr.bf16.mxu0 0
    %667 = vmatpush1.bf16.msra.mxu0 0
    %668 = vmatprep.subr.bf16.mxu0 0
    %669 = vmatpush1.bf16.msra.mxu0 0
    %670 = vmatprep.mubr.bf16.mxu0 0
    %671 = vmatmul.mubr.bf16.gmra.mrb[0].mxu0 %v629
    %v672 = vpop.f32.mrb[0].mxu0
    %v673 = vadd.f32 0.0, %v672
    %v674 = vpop.f32.mrb[0].mxu0
    %v675 = vadd.f32 0.0, %v674
    %v676 = vpop.f32.mrb[0].mxu0
    %v677 = vadd.f32 0.0, %v676
    %v678 = vpop.f32.mrb[0].mxu0
    %v679 = vadd.f32 0.0, %v678
    %680 = vdwg.mxu0
    %v681 = vadd.f32 %v567, %v673
    %v682 = vadd.f32 %v568, %v675
    %v683 = vadd.f32 %v569, %v677
    %v684 = vadd.f32 %v570, %v679
    %685 = vst [vmem:[#allocation5] sm:$0xff] %v681
    %686 = vst [vmem:[#allocation5 + $0x8] sm:$0xff] %v682
    %687 = vst [vmem:[#allocation5 + $0x10] sm:$0xff] %v683
    %688 = vst [vmem:[#allocation5 + $0x18] sm:$0xff] %v684
    %689 = vst.msk [vmem:[#allocation7] sm:$0x1] %vm514, %v525
    %v690 = vlaneseq
    %v691 = vshrl.u32 %v690, 7
    %v692 = vsub.s32 0, %v691
    %v693 = vrot.slane %v525, %v692
    %v694 = vmul.f32 %v494, %v693
    %v695 = vmul.f32 %v495, %v693
    %v696 = vsel %vm484, %v694, 0.0
    %697 = vadd.xlane.f32.xlu0 %v696
    %v698 = vpop.xlane.xlu0 %697
    %v699 = vsel %vm484, %v695, 0.0
    %700 = vadd.xlane.f32.xlu0 %v699
    %v701 = vpop.xlane.xlu0 %700
    %702 = vst.msk [vmem:[#allocation4] sm:$0xff] %vm439, %v698
    %703 = vst.msk [vmem:[#allocation4 + $0x8] sm:$0xff] %vm439, %v701
    %v704 = vld [vmem:[%s4] sm:$0xf]
    %v705 = vld [vmem:[%s4 + $0x4] sm:$0xf]
    %s706 = scalar_lea.vmem %s0, 8
    %v707 = vld [vmem:[%s706] sm:$0xff]
    %v708 = vld [vmem:[%s8] sm:$0xff]
    %v709 = vld [vmem:[%s8 + $0x8] sm:$0xff]
    %711 = vset.pattern.permute.xlu0 0
    %712 = vperm.xlu0 %711, %v708
    %v713 = vpop.permute.xlu0 %712
    %716 = vset.pattern.permute.xlu0 0
    %717 = vperm.xlu0 %716, %v709
    %v718 = vpop.permute.xlu0 %717
    %v722 = vunpack.c.l.b16 %v704
    %v723 = vunpack.c.l.b16 %v705
    %v724 = vpack.c.b16 %v723, %v722
    %v726 = vunpack.c.l.b16 %v707
    %v727 = vunpack.c.h.b16 %v707
    %v728 = vpack.c.b16 %v726, %v726
    %v729 = vpack.c.b16 %v727, %v727
    %v731 = vsel %vm119, %v724, 0
    %v734 = vsel %vm123, %v728, 0
    %v737 = vsel %vm123, %v729, 0
    %739 = vmatprep.subr.bf16.mxu0 %v737
    %740 = vmatpush1.bf16.msra.mxu0 %v734
    %741 = vmatprep.subr.bf16.mxu0 0
    %742 = vmatpush1.bf16.msra.mxu0 0
    %743 = vmatprep.subr.bf16.mxu0 0
    %744 = vmatpush1.bf16.msra.mxu0 0
    %745 = vmatprep.subr.bf16.mxu0 0
    %746 = vmatpush1.bf16.msra.mxu0 0
    %747 = vmatprep.subr.bf16.mxu0 0
    %748 = vmatpush1.bf16.msra.mxu0 0
    %749 = vmatprep.subr.bf16.mxu0 0
    %750 = vmatpush1.bf16.msra.mxu0 0
    %751 = vmatprep.subr.bf16.mxu0 0
    %752 = vmatpush1.bf16.msra.mxu0 0
    %753 = vmatprep.subr.bf16.mxu0 0
    %754 = vmatpush1.bf16.msra.mxu0 0
    %755 = vmatprep.subr.bf16.mxu0 0
    %756 = vmatpush1.bf16.msra.mxu0 0
    %757 = vmatprep.subr.bf16.mxu0 0
    %758 = vmatpush1.bf16.msra.mxu0 0
    %759 = vmatprep.subr.bf16.mxu0 0
    %760 = vmatpush1.bf16.msra.mxu0 0
    %761 = vmatprep.subr.bf16.mxu0 0
    %762 = vmatpush1.bf16.msra.mxu0 0
    %763 = vmatprep.subr.bf16.mxu0 0
    %764 = vmatpush1.bf16.msra.mxu0 0
    %765 = vmatprep.subr.bf16.mxu0 0
    %766 = vmatpush1.bf16.msra.mxu0 0
    %767 = vmatprep.subr.bf16.mxu0 0
    %768 = vmatpush1.bf16.msra.mxu0 0
    %769 = vmatprep.subr.bf16.mxu0 0
    %770 = vmatpush1.bf16.msra.mxu0 0
    %771 = vmatprep.mubr.bf16.mxu0 0
    %772 = vmatmul.mubr.bf16.gmra.mrb[0].mxu0 %v731
    %v773 = vpop.f32.mrb[0].mxu0
    %v774 = vadd.f32 %v713, %v773
    %v775 = vpop.f32.mrb[0].mxu0
    %v776 = vadd.f32 %v713, %v775
    %v777 = vpop.f32.mrb[0].mxu0
    %v778 = vadd.f32 %v718, %v777
    %v779 = vpop.f32.mrb[0].mxu0
    %v780 = vadd.f32 %v718, %v779
    %781 = vdwg.mxu0
    %v782 = vmax.f32 %v774, 0.0
    %v783 = vmax.f32 %v776, 0.0
    %v784 = vmax.f32 %v778, 0.0
    %v785 = vmax.f32 %v780, 0.0
    %v786 = vld [vmem:[%s5] sm:$0xf]
    %v787 = vld [vmem:[%s5 + $0x4] sm:$0xf]
    %s788 = scalar_lea.vmem %s1, 8
    %v789 = vld [vmem:[%s788] sm:$0xf]
    %v790 = vld [vmem:[%s788 + $0x4] sm:$0xf]
    %v791 = vld [vmem:[%s9] sm:$0xff]
    %v792 = vld [vmem:[%s9 + $0x8] sm:$0xff]
    %794 = vset.pattern.permute.xlu0 0
    %795 = vperm.xlu0 %794, %v791
    %v796 = vpop.permute.xlu0 %795
    %799 = vset.pattern.permute.xlu0 0
    %800 = vperm.xlu0 %799, %v792
    %v801 = vpop.permute.xlu0 %800
    %v805 = vunpack.c.l.b16 %v786
    %v806 = vunpack.c.l.b16 %v787
    %v807 = vpack.c.b16 %v806, %v805
    %v810 = vunpack.c.l.b16 %v789
    %v811 = vunpack.c.l.b16 %v790
    %v812 = vpack.c.b16 %v811, %v810
    %v815 = vsel %vm204, %v807, 0
    %817 = vmatprep.subr.bf16.mxu0 0
    %818 = vmatpush1.bf16.msra.mxu0 %v812
    %819 = vmatprep.subr.bf16.mxu0 0
    %820 = vmatpush1.bf16.msra.mxu0 0
    %821 = vmatprep.subr.bf16.mxu0 0
    %822 = vmatpush1.bf16.msra.mxu0 0
    %823 = vmatprep.subr.bf16.mxu0 0
    %824 = vmatpush1.bf16.msra.mxu0 0
    %825 = vmatprep.subr.bf16.mxu0 0
    %826 = vmatpush1.bf16.msra.mxu0 0
    %827 = vmatprep.subr.bf16.mxu0 0
    %828 = vmatpush1.bf16.msra.mxu0 0
    %829 = vmatprep.subr.bf16.mxu0 0
    %830 = vmatpush1.bf16.msra.mxu0 0
    %831 = vmatprep.subr.bf16.mxu0 0
    %832 = vmatpush1.bf16.msra.mxu0 0
    %833 = vmatprep.subr.bf16.mxu0 0
    %834 = vmatpush1.bf16.msra.mxu0 0
    %835 = vmatprep.subr.bf16.mxu0 0
    %836 = vmatpush1.bf16.msra.mxu0 0
    %837 = vmatprep.subr.bf16.mxu0 0
    %838 = vmatpush1.bf16.msra.mxu0 0
    %839 = vmatprep.subr.bf16.mxu0 0
    %840 = vmatpush1.bf16.msra.mxu0 0
    %841 = vmatprep.subr.bf16.mxu0 0
    %842 = vmatpush1.bf16.msra.mxu0 0
    %843 = vmatprep.subr.bf16.mxu0 0
    %844 = vmatpush1.bf16.msra.mxu0 0
    %845 = vmatprep.subr.bf16.mxu0 0
    %846 = vmatpush1.bf16.msra.mxu0 0
    %847 = vmatprep.subr.bf16.mxu0 0
    %848 = vmatpush1.bf16.msra.mxu0 0
    %849 = vmatprep.mubr.bf16.mxu0 0
    %850 = vmatmul.mubr.bf16.gmra.mrb[0].mxu0 %v815
    %v851 = vpop.f32.mrb[0].mxu0
    %v852 = vadd.f32 %v796, %v851
    %v853 = vpop.f32.mrb[0].mxu0
    %v854 = vpop.f32.mrb[0].mxu0
    %v855 = vadd.f32 %v801, %v854
    %v856 = vpop.f32.mrb[0].mxu0
    %857 = vdwg.mxu0
    %v858 = vmax.f32 %v852, 0.0
    %v859 = vmax.f32 %v855, 0.0
    %v860 = vld [vmem:[%s6] sm:$0xf]
    %v861 = vld [vmem:[%s6 + $0x4] sm:$0xf]
    %s862 = scalar_lea.vmem %s2, 16
    %v863 = vld [vmem:[%s862] sm:$0xf]
    %v864 = vld [vmem:[%s862 + $0x4] sm:$0xf]
    %v865 = vld [vmem:[%s862 + $0x8] sm:$0xf]
    %v866 = vld [vmem:[%s862 + $0xc] sm:$0xf]
    %v867 = vld [vmem:[%s10] sm:$0xff]
    %v868 = vld [vmem:[%s10 + $0x8] sm:$0xff]
    %870 = vset.pattern.permute.xlu0 0
    %871 = vperm.xlu0 %870, %v867
    %v872 = vpop.permute.xlu0 %871
    %875 = vset.pattern.permute.xlu0 0
    %876 = vperm.xlu0 %875, %v868
    %v877 = vpop.permute.xlu0 %876
    %v881 = vunpack.c.l.b16 %v860
    %v882 = vunpack.c.l.b16 %v861
    %v883 = vpack.c.b16 %v882, %v881
    %v888 = vunpack.c.l.b16 %v863
    %v889 = vunpack.c.l.b16 %v864
    %v890 = vunpack.c.l.b16 %v865
    %v891 = vunpack.c.l.b16 %v866
    %v892 = vpack.c.b16 %v889, %v888
    %v893 = vpack.c.b16 %v891, %v890
    %v897 = vsel %vm286, %v883, 0
    %899 = vmatprep.subr.bf16.mxu0 0
    %900 = vmatpush1.bf16.msra.mxu0 %v892
    %901 = vmatprep.subr.bf16.mxu0 0
    %902 = vmatpush1.bf16.msra.mxu0 %v893
    %903 = vmatprep.subr.bf16.mxu0 0
    %904 = vmatpush1.bf16.msra.mxu0 0
    %905 = vmatprep.subr.bf16.mxu0 0
    %906 = vmatpush1.bf16.msra.mxu0 0
    %907 = vmatprep.subr.bf16.mxu0 0
    %908 = vmatpush1.bf16.msra.mxu0 0
    %909 = vmatprep.subr.bf16.mxu0 0
    %910 = vmatpush1.bf16.msra.mxu0 0
    %911 = vmatprep.subr.bf16.mxu0 0
    %912 = vmatpush1.bf16.msra.mxu0 0
    %913 = vmatprep.subr.bf16.mxu0 0
    %914 = vmatpush1.bf16.msra.mxu0 0
    %915 = vmatprep.subr.bf16.mxu0 0
    %916 = vmatpush1.bf16.msra.mxu0 0
    %917 = vmatprep.subr.bf16.mxu0 0
    %918 = vmatpush1.bf16.msra.mxu0 0
    %919 = vmatprep.subr.bf16.mxu0 0
    %920 = vmatpush1.bf16.msra.mxu0 0
    %921 = vmatprep.subr.bf16.mxu0 0
    %922 = vmatpush1.bf16.msra.mxu0 0
    %923 = vmatprep.subr.bf16.mxu0 0
    %924 = vmatpush1.bf16.msra.mxu0 0
    %925 = vmatprep.subr.bf16.mxu0 0
    %926 = vmatpush1.bf16.msra.mxu0 0
    %927 = vmatprep.subr.bf16.mxu0 0
    %928 = vmatpush1.bf16.msra.mxu0 0
    %929 = vmatprep.subr.bf16.mxu0 0
    %930 = vmatpush1.bf16.msra.mxu0 0
    %931 = vmatprep.mubr.bf16.mxu0 0
    %932 = vmatmul.mubr.bf16.gmra.mrb[0].mxu0 %v897
    %v933 = vpop.f32.mrb[0].mxu0
    %v934 = vadd.f32 %v872, %v933
    %v935 = vpop.f32.mrb[0].mxu0
    %v936 = vpop.f32.mrb[0].mxu0
    %v937 = vadd.f32 %v877, %v936
    %v938 = vpop.f32.mrb[0].mxu0
    %939 = vdwg.mxu0
    %v940 = vmax.f32 %v934, 0.0
    %v941 = vmax.f32 %v937, 0.0
    %v942 = vld [vmem:[%s7] sm:$0xf]
    %v943 = vld [vmem:[%s7 + $0x4] sm:$0xf]
    %s944 = scalar_lea.vmem %s3, 32
    %v945 = vld [vmem:[%s944] sm:$0xf]
    %v946 = vld [vmem:[%s944 + $0x4] sm:$0xf]
    %v947 = vld [vmem:[%s944 + $0x8] sm:$0xf]
    %v948 = vld [vmem:[%s944 + $0xc] sm:$0xf]
    %v949 = vld [vmem:[%s944 + $0x10] sm:$0xf]
    %v950 = vld [vmem:[%s944 + $0x14] sm:$0xf]
    %v951 = vld [vmem:[%s944 + $0x18] sm:$0xf]
    %v952 = vld [vmem:[%s944 + $0x1c] sm:$0xf]
    %v953 = vld [vmem:[%s11] sm:$0xff]
    %v954 = vld [vmem:[%s11 + $0x8] sm:$0xff]
    %956 = vset.pattern.permute.xlu0 0
    %957 = vperm.xlu0 %956, %v953
    %v958 = vpop.permute.xlu0 %957
    %961 = vset.pattern.permute.xlu0 0
    %962 = vperm.xlu0 %961, %v954
    %v963 = vpop.permute.xlu0 %962
    %v967 = vunpack.c.l.b16 %v942
    %v968 = vunpack.c.l.b16 %v943
    %v969 = vpack.c.b16 %v968, %v967
    %v978 = vunpack.c.l.b16 %v945
    %v979 = vunpack.c.l.b16 %v946
    %v980 = vunpack.c.l.b16 %v947
    %v981 = vunpack.c.l.b16 %v948
    %v982 = vunpack.c.l.b16 %v949
    %v983 = vunpack.c.l.b16 %v950
    %v984 = vunpack.c.l.b16 %v951
    %v985 = vunpack.c.l.b16 %v952
    %v986 = vpack.c.b16 %v979, %v978
    %v987 = vpack.c.b16 %v981, %v980
    %v988 = vpack.c.b16 %v983, %v982
    %v989 = vpack.c.b16 %v985, %v984
    %v995 = vsel %vm384, %v969, 0
    %997 = vmatprep.subr.bf16.mxu0 0
    %998 = vmatpush1.bf16.msra.mxu0 %v986
    %999 = vmatprep.subr.bf16.mxu0 0
    %1000 = vmatpush1.bf16.msra.mxu0 %v987
    %1001 = vmatprep.subr.bf16.mxu0 0
    %1002 = vmatpush1.bf16.msra.mxu0 %v988
    %1003 = vmatprep.subr.bf16.mxu0 0
    %1004 = vmatpush1.bf16.msra.mxu0 %v989
    %1005 = vmatprep.subr.bf16.mxu0 0
    %1006 = vmatpush1.bf16.msra.mxu0 0
    %1007 = vmatprep.subr.bf16.mxu0 0
    %1008 = vmatpush1.bf16.msra.mxu0 0
    %1009 = vmatprep.subr.bf16.mxu0 0
    %1010 = vmatpush1.bf16.msra.mxu0 0
    %1011 = vmatprep.subr.bf16.mxu0 0
    %1012 = vmatpush1.bf16.msra.mxu0 0
    %1013 = vmatprep.subr.bf16.mxu0 0
    %1014 = vmatpush1.bf16.msra.mxu0 0
    %1015 = vmatprep.subr.bf16.mxu0 0
    %1016 = vmatpush1.bf16.msra.mxu0 0
    %1017 = vmatprep.subr.bf16.mxu0 0
    %1018 = vmatpush1.bf16.msra.mxu0 0
    %1019 = vmatprep.subr.bf16.mxu0 0
    %1020 = vmatpush1.bf16.msra.mxu0 0
    %1021 = vmatprep.subr.bf16.mxu0 0
    %1022 = vmatpush1.bf16.msra.mxu0 0
    %1023 = vmatprep.subr.bf16.mxu0 0
    %1024 = vmatpush1.bf16.msra.mxu0 0
    %1025 = vmatprep.subr.bf16.mxu0 0
    %1026 = vmatpush1.bf16.msra.mxu0 0
    %1027 = vmatprep.subr.bf16.mxu0 0
    %1028 = vmatpush1.bf16.msra.mxu0 0
    %1029 = vmatprep.mubr.bf16.mxu0 0
    %1030 = vmatmul.mubr.bf16.gmra.mrb[0].mxu0 %v995
    %v1031 = vpop.f32.mrb[0].mxu0
    %v1032 = vadd.f32 %v958, %v1031
    %v1033 = vpop.f32.mrb[0].mxu0
    %v1034 = vpop.f32.mrb[0].mxu0
    %v1035 = vadd.f32 %v963, %v1034
    %v1036 = vpop.f32.mrb[0].mxu0
    %1037 = vdwg.mxu0
    %v1038 = vmax.f32 %v1032, 0.0
    %v1039 = vmax.f32 %v1035, 0.0
    %v1040 = vadd.f32 %v782, %v783
    %1041 = vadd.xlane.f32.xlu0 %v1040
    %v1042 = vpop.xlane.xlu0 %1041
    %v1043 = vadd.f32 %v784, %v785
    %1044 = vadd.xlane.f32.xlu0 %v1043
    %v1045 = vpop.xlane.xlu0 %1044
    %v1046 = vmul.f32 %v1042, 0.00390625
    %v1047 = vmul.f32 %v1045, 0.00390625
    %1048 = vst.msk [vmem:[#allocation2] sm:$0xff] %vm439, %v1046
    %1049 = vst.msk [vmem:[#allocation2 + $0x8] sm:$0xff] %vm439, %v1047
    %v1050 = vmul.f32 %v858, %v446
    %v1051 = vmul.f32 %v859, %v446
    %v1052 = vsel %vm384, %v1050, 0.0
    %1053 = vadd.xlane.f32.xlu0 %v1052
    %v1054 = vpop.xlane.xlu0 %1053
    %v1055 = vsel %vm384, %v1051, 0.0
    %1056 = vadd.xlane.f32.xlu0 %v1055
    %v1057 = vpop.xlane.xlu0 %1056
    %1058 = vst.msk [vmem:[#allocation2] sm:$0xff] %vm456, %v1054
    %1059 = vst.msk [vmem:[#allocation2 + $0x8] sm:$0xff] %vm456, %v1057
    %v1060 = vmul.f32 %v940, %v463
    %v1061 = vmul.f32 %v941, %v463
    %v1062 = vsel %vm204, %v1060, 0.0
    %1063 = vadd.xlane.f32.xlu0 %v1062
    %v1064 = vpop.xlane.xlu0 %1063
    %v1065 = vsel %vm204, %v1061, 0.0
    %1066 = vadd.xlane.f32.xlu0 %v1065
    %v1067 = vpop.xlane.xlu0 %1066
    %1068 = vst.msk [vmem:[#allocation2] sm:$0xff] %vm473, %v1064
    %1069 = vst.msk [vmem:[#allocation2 + $0x8] sm:$0xff] %vm473, %v1067
    %v1070 = vmul.f32 %v1038, %v480
    %v1071 = vmul.f32 %v1039, %v480
    %v1072 = vsel %vm484, %v1070, 0.0
    %1073 = vadd.xlane.f32.xlu0 %v1072
    %v1074 = vpop.xlane.xlu0 %1073
    %v1075 = vsel %vm484, %v1071, 0.0
    %1076 = vadd.xlane.f32.xlu0 %v1075
    %v1077 = vpop.xlane.xlu0 %1076
    %1078 = vst.msk [vmem:[#allocation2] sm:$0xff] %vm491, %v1074
    %1079 = vst.msk [vmem:[#allocation2 + $0x8] sm:$0xff] %vm491, %v1077
    %v1080 = vld [vmem:[#allocation2] sm:$0xff]
    %v1081 = vld [vmem:[#allocation2 + $0x8] sm:$0xff]
    %v1082 = vmul.f32 %v77, %v1080
    %v1083 = vmul.f32 %v78, %v1081
    %v1084 = vsel %vm484, %v1082, 0.0
    %v1085 = vsel %vm484, %v1083, 0.0
    %v1086 = vadd.f32 %v1084, %v1085
    %v1087 = vrot.slane %v1086, 4
    %v1088 = vadd.f32 %v1086, %v1087
    %v1089 = vrot.slane %v1088, 2
    %v1090 = vadd.f32 %v1088, %v1089
    %v1091 = vrot.slane %v1090, 1
    %v1092 = vadd.f32 %v1090, %v1091
    %v1093 = vadd.f32 %v1092, %v79
    %v1094 = vxor.u32 %v1093, 2147483648
    %v1095 = vmul.f32 %v1094, 1.442695
    %v1096 = vpow.pop %v1095
    %v1097 = vadd.f32 %v1096, 1.0
    %v1098 = vrcp.pop %v1097
    %v1099 = vmul.f32 1.0, %v1098
    %v1100 = vsel %vm514, %v1099, -inf
    %1101 = vmax.xlane.f32.xlu0 %v1100
    %v1102 = vpop.xlane.xlu0 %1101
    %v1103 = vsub.f32 %v1099, %v1102
    %v1104 = vmul.f32 %v1103, 1.442695
    %v1105 = vpow.pop %v1104
    %v1106 = vsel %vm514, %v1105, 0.0
    %1107 = vadd.xlane.f32.xlu0 %v1106
    %v1108 = vpop.xlane.xlu0 %1107
    %v1109 = vrcp.pop %v1108
    %v1110 = vmul.f32 %v1105, %v1109
    %1112 = vrot.lane.b32.xlu0 %v1110, 127
    %v1113 = vpop.permute.xlu0 %1112
    %s1114 = vtos %v1113
    %v1115 = vstv %s1114
    %v1117 = vmul.f32 %v858, %v1115
    %v1118 = vmul.f32 %v859, %v1115
    %v1119 = vpack.c.bf16 %v1118, %v1117
    %1120 = vst.msk [vmem:[#allocation3] sm:$0xff] %vm384, %v1119
    %1121 = vrot.lane.b32.xlu0 %v1110, 126
    %v1122 = vpop.permute.xlu0 %1121
    %s1123 = vtos %v1122
    %v1124 = vstv %s1123
    %v1126 = vmul.f32 %v940, %v1124
    %v1127 = vmul.f32 %v941, %v1124
    %v1128 = vpack.c.bf16 %v1127, %v1126
    %1130 = vrot.lane.b32.xlu0 %v1128, 64
    %v1131 = vpop.permute.xlu0 %1130
    %1133 = vst.msk [vmem:[#allocation3] sm:$0xff] %vm548, %v1131
    %1134 = vrot.lane.b32.xlu0 %v1110, 125
    %v1135 = vpop.permute.xlu0 %1134
    %s1136 = vtos %v1135
    %v1137 = vstv %s1136
    %v1139 = vmul.f32 %v1038, %v1137
    %v1140 = vmul.f32 %v1039, %v1137
    %v1141 = vpack.c.bf16 %v1140, %v1139
    %1143 = vrot.lane.b32.xlu0 %v1141, 80
    %v1144 = vpop.permute.xlu0 %1143
    %1146 = vst.msk [vmem:[#allocation3] sm:$0xff] %vm562, %v1144
    %s1147 = vtos %v1110
    %v1148 = vstv %s1147
    %v1150 = vmul.f32 %v782, %v1148
    %v1151 = vmul.f32 %v783, %v1148
    %v1152 = vmul.f32 %v784, %v1148
    %v1153 = vmul.f32 %v785, %v1148
    %v1154 = vld [vmem:[#allocation3] sm:$0xff]
    %v1156 = vsel %vm627, %v1154, 0
    %1158 = vmatprep.subr.bf16.mxu0 %v606
    %1159 = vmatpush1.bf16.msra.mxu0 %v605
    %1160 = vmatprep.subr.bf16.mxu0 %v608
    %1161 = vmatpush1.bf16.msra.mxu0 %v607
    %1162 = vmatprep.subr.bf16.mxu0 %v610
    %1163 = vmatpush1.bf16.msra.mxu0 %v609
    %1164 = vmatprep.subr.bf16.mxu0 %v612
    %1165 = vmatpush1.bf16.msra.mxu0 %v611
    %1166 = vmatprep.subr.bf16.mxu0 %v614
    %1167 = vmatpush1.bf16.msra.mxu0 %v613
    %1168 = vmatprep.subr.bf16.mxu0 %v636
    %1169 = vmatpush1.bf16.msra.mxu0 %v633
    %1170 = vmatprep.subr.bf16.mxu0 0
    %1171 = vmatpush1.bf16.msra.mxu0 0
    %1172 = vmatprep.subr.bf16.mxu0 0
    %1173 = vmatpush1.bf16.msra.mxu0 0
    %1174 = vmatprep.subr.bf16.mxu0 0
    %1175 = vmatpush1.bf16.msra.mxu0 0
    %1176 = vmatprep.subr.bf16.mxu0 0
    %1177 = vmatpush1.bf16.msra.mxu0 0
    %1178 = vmatprep.subr.bf16.mxu0 0
    %1179 = vmatpush1.bf16.msra.mxu0 0
    %1180 = vmatprep.subr.bf16.mxu0 0
    %1181 = vmatpush1.bf16.msra.mxu0 0
    %1182 = vmatprep.subr.bf16.mxu0 0
    %1183 = vmatpush1.bf16.msra.mxu0 0
    %1184 = vmatprep.subr.bf16.mxu0 0
    %1185 = vmatpush1.bf16.msra.mxu0 0
    %1186 = vmatprep.subr.bf16.mxu0 0
    %1187 = vmatpush1.bf16.msra.mxu0 0
    %1188 = vmatprep.subr.bf16.mxu0 0
    %1189 = vmatpush1.bf16.msra.mxu0 0
    %1190 = vmatprep.mubr.bf16.mxu0 0
    %1191 = vmatmul.mubr.bf16.gmra.mrb[0].mxu0 %v1156
    %v1192 = vpop.f32.mrb[0].mxu0
    %v1193 = vadd.f32 0.0, %v1192
    %v1194 = vpop.f32.mrb[0].mxu0
    %v1195 = vadd.f32 0.0, %v1194
    %v1196 = vpop.f32.mrb[0].mxu0
    %v1197 = vadd.f32 0.0, %v1196
    %v1198 = vpop.f32.mrb[0].mxu0
    %v1199 = vadd.f32 0.0, %v1198
    %1200 = vdwg.mxu0
    %v1201 = vadd.f32 %v1150, %v1193
    %v1202 = vadd.f32 %v1151, %v1195
    %v1203 = vadd.f32 %v1152, %v1197
    %v1204 = vadd.f32 %v1153, %v1199
    %s1205 = scalar_lea.vmem [#allocation5], 32
    %1206 = vst [vmem:[%s1205] sm:$0xff] %v1201
    %1207 = vst [vmem:[%s1205 + $0x8] sm:$0xff] %v1202
    %1208 = vst [vmem:[%s1205 + $0x10] sm:$0xff] %v1203
    %1209 = vst [vmem:[%s1205 + $0x18] sm:$0xff] %v1204
    %1210 = vst.msk [vmem:[#allocation7 + $0x1] sm:$0x1] %vm514, %v1110
    %v1211 = vlaneseq
    %v1212 = vshrl.u32 %v1211, 7
    %v1213 = vsub.s32 0, %v1212
    %v1214 = vrot.slane %v1110, %v1213
    %v1215 = vmul.f32 %v1080, %v1214
    %v1216 = vmul.f32 %v1081, %v1214
    %v1217 = vsel %vm484, %v1215, 0.0
    %1218 = vadd.xlane.f32.xlu0 %v1217
    %v1219 = vpop.xlane.xlu0 %1218
    %v1220 = vsel %vm484, %v1216, 0.0
    %1221 = vadd.xlane.f32.xlu0 %v1220
    %v1222 = vpop.xlane.xlu0 %1221
    %1223 = vst.msk [vmem:[#allocation4] sm:$0xff] %vm456, %v1219
    %1224 = vst.msk [vmem:[#allocation4 + $0x8] sm:$0xff] %vm456, %v1222
    %v1225 = vld [vmem:[%s18] sm:$0xff]
    %v1226 = vld [vmem:[%s18 + $0x8] sm:$0xff]
    %v1227 = vld [vmem:[%s18 + $0x10] sm:$0xff]
    %v1228 = vld [vmem:[%s18 + $0x18] sm:$0xff]
    %v1229 = vld [vmem:[%s18 + $0x20] sm:$0xff]
    %v1230 = vld [vmem:[%s18 + $0x28] sm:$0xff]
    %v1231 = vld [vmem:[%s18 + $0x30] sm:$0xff]
    %v1232 = vld [vmem:[%s18 + $0x38] sm:$0xff]
    %v1233 = vld [vmem:[%s18 + $0x40] sm:$0xff]
    %v1234 = vld [vmem:[%s18 + $0x48] sm:$0xff]
    %v1235 = vld [vmem:[%s18 + $0x50] sm:$0xff]
    %v1236 = vld [vmem:[%s18 + $0x58] sm:$0xff]
    %v1237 = vld [vmem:[%s18 + $0x60] sm:$0xff]
    %v1238 = vld [vmem:[%s18 + $0x68] sm:$0xff]
    %v1239 = vld [vmem:[%s18 + $0x70] sm:$0xff]
    %v1240 = vld [vmem:[%s18 + $0x78] sm:$0xff]
    %v1241 = vld [vmem:[#allocation4] sm:$0xff]
    %v1242 = vld [vmem:[#allocation4 + $0x8] sm:$0xff]
    %v1243 = vld [vmem:[%s19] sm:$0xff]
    %v1244 = vld [vmem:[%s19 + $0x8] sm:$0xff]
    %v1245 = vld [vmem:[%s19 + $0x10] sm:$0xff]
    %v1246 = vld [vmem:[%s19 + $0x18] sm:$0xff]
    %v1247 = vld [vmem:[%s19 + $0x20] sm:$0xff]
    %v1248 = vld [vmem:[%s19 + $0x28] sm:$0xff]
    %v1249 = vld [vmem:[%s19 + $0x30] sm:$0xff]
    %v1250 = vld [vmem:[%s19 + $0x38] sm:$0xff]
    %v1251 = vld [vmem:[%s19 + $0x40] sm:$0xff]
    %v1252 = vld [vmem:[%s19 + $0x48] sm:$0xff]
    %v1253 = vld [vmem:[%s19 + $0x50] sm:$0xff]
    %v1254 = vld [vmem:[%s19 + $0x58] sm:$0xff]
    %v1255 = vld [vmem:[%s19 + $0x60] sm:$0xff]
    %v1256 = vld [vmem:[%s19 + $0x68] sm:$0xff]
    %v1257 = vld [vmem:[%s19 + $0x70] sm:$0xff]
    %v1258 = vld [vmem:[%s19 + $0x78] sm:$0xff]
    %1260 = vset.pattern.permute.xlu0 0
    %1261 = vperm.xlu0 %1260, %v1243
    %v1262 = vpop.permute.xlu0 %1261
    %1265 = vset.pattern.permute.xlu0 0
    %1266 = vperm.xlu0 %1265, %v1244
    %v1267 = vpop.permute.xlu0 %1266
    %1270 = vset.pattern.permute.xlu0 0
    %1271 = vperm.xlu0 %1270, %v1245
    %v1272 = vpop.permute.xlu0 %1271
    %1275 = vset.pattern.permute.xlu0 0
    %1276 = vperm.xlu0 %1275, %v1246
    %v1277 = vpop.permute.xlu0 %1276
    %1280 = vset.pattern.permute.xlu0 0
    %1281 = vperm.xlu0 %1280, %v1247
    %v1282 = vpop.permute.xlu0 %1281
    %1285 = vset.pattern.permute.xlu0 0
    %1286 = vperm.xlu0 %1285, %v1248
    %v1287 = vpop.permute.xlu0 %1286
    %1290 = vset.pattern.permute.xlu0 0
    %1291 = vperm.xlu0 %1290, %v1249
    %v1292 = vpop.permute.xlu0 %1291
    %1295 = vset.pattern.permute.xlu0 0
    %1296 = vperm.xlu0 %1295, %v1250
    %v1297 = vpop.permute.xlu0 %1296
    %1300 = vset.pattern.permute.xlu0 0
    %1301 = vperm.xlu0 %1300, %v1251
    %v1302 = vpop.permute.xlu0 %1301
    %1305 = vset.pattern.permute.xlu0 0
    %1306 = vperm.xlu0 %1305, %v1252
    %v1307 = vpop.permute.xlu0 %1306
    %1310 = vset.pattern.permute.xlu0 0
    %1311 = vperm.xlu0 %1310, %v1253
    %v1312 = vpop.permute.xlu0 %1311
    %1315 = vset.pattern.permute.xlu0 0
    %1316 = vperm.xlu0 %1315, %v1254
    %v1317 = vpop.permute.xlu0 %1316
    %1320 = vset.pattern.permute.xlu0 0
    %1321 = vperm.xlu0 %1320, %v1255
    %v1322 = vpop.permute.xlu0 %1321
    %1325 = vset.pattern.permute.xlu0 0
    %1326 = vperm.xlu0 %1325, %v1256
    %v1327 = vpop.permute.xlu0 %1326
    %1330 = vset.pattern.permute.xlu0 0
    %1331 = vperm.xlu0 %1330, %v1257
    %v1332 = vpop.permute.xlu0 %1331
    %1335 = vset.pattern.permute.xlu0 0
    %1336 = vperm.xlu0 %1335, %v1258
    %v1337 = vpop.permute.xlu0 %1336
    %v1340 = vsel %vm204, %v1225, 0
    %v1343 = vsel %vm204, %v1226, 0
    %v1346 = vsel %vm204, %v1227, 0
    %v1349 = vsel %vm204, %v1228, 0
    %v1352 = vsel %vm204, %v1229, 0
    %v1355 = vsel %vm204, %v1230, 0
    %v1358 = vsel %vm204, %v1231, 0
    %v1361 = vsel %vm204, %v1232, 0
    %v1364 = vsel %vm204, %v1233, 0
    %v1367 = vsel %vm204, %v1234, 0
    %v1370 = vsel %vm204, %v1235, 0
    %v1373 = vsel %vm204, %v1236, 0
    %v1376 = vsel %vm204, %v1237, 0
    %v1379 = vsel %vm204, %v1238, 0
    %v1382 = vsel %vm204, %v1239, 0
    %v1385 = vsel %vm204, %v1240, 0
    %1387 = vmatprep.subr.mxu0 0.0
    %1388 = vmatpush1.msra.mxu0 %v1241
    %1389 = vmatprep.subr.mxu0 0.0
    %1390 = vmatpush1.msra.mxu0 %v1242
    %1391 = vmatprep.subr.mxu0 0.0
    %1392 = vmatpush1.msra.mxu0 0.0
    %1393 = vmatprep.subr.mxu0 0.0
    %1394 = vmatpush1.msra.mxu0 0.0
    %1395 = vmatprep.subr.mxu0 0.0
    %1396 = vmatpush1.msra.mxu0 0.0
    %1397 = vmatprep.subr.mxu0 0.0
    %1398 = vmatpush1.msra.mxu0 0.0
    %1399 = vmatprep.subr.mxu0 0.0
    %1400 = vmatpush1.msra.mxu0 0.0
    %1401 = vmatprep.subr.mxu0 0.0
    %1402 = vmatpush1.msra.mxu0 0.0
    %1403 = vmatprep.subr.mxu0 0.0
    %1404 = vmatpush1.msra.mxu0 0.0
    %1405 = vmatprep.subr.mxu0 0.0
    %1406 = vmatpush1.msra.mxu0 0.0
    %1407 = vmatprep.subr.mxu0 0.0
    %1408 = vmatpush1.msra.mxu0 0.0
    %1409 = vmatprep.subr.mxu0 0.0
    %1410 = vmatpush1.msra.mxu0 0.0
    %1411 = vmatprep.subr.mxu0 0.0
    %1412 = vmatpush1.msra.mxu0 0.0
    %1413 = vmatprep.subr.mxu0 0.0
    %1414 = vmatpush1.msra.mxu0 0.0
    %1415 = vmatprep.subr.mxu0 0.0
    %1416 = vmatpush1.msra.mxu0 0.0
    %1417 = vmatprep.subr.mxu0 0.0
    %1418 = vmatpush1.msra.mxu0 0.0
    %1419 = vmatprep.subr.mxu0 0.0
    %1420 = vmatpush1.msra.mxu0 0.0
    %1421 = vmatprep.subr.mxu0 0.0
    %1422 = vmatpush1.msra.mxu0 0.0
    %1423 = vmatprep.subr.mxu0 0.0
    %1424 = vmatpush1.msra.mxu0 0.0
    %1425 = vmatprep.subr.mxu0 0.0
    %1426 = vmatpush1.msra.mxu0 0.0
    %1427 = vmatprep.subr.mxu0 0.0
    %1428 = vmatpush1.msra.mxu0 0.0
    %1429 = vmatprep.subr.mxu0 0.0
    %1430 = vmatpush1.msra.mxu0 0.0
    %1431 = vmatprep.subr.mxu0 0.0
    %1432 = vmatpush1.msra.mxu0 0.0
    %1433 = vmatprep.subr.mxu0 0.0
    %1434 = vmatpush1.msra.mxu0 0.0
    %1435 = vmatprep.subr.mxu0 0.0
    %1436 = vmatpush1.msra.mxu0 0.0
    %1437 = vmatprep.subr.mxu0 0.0
    %1438 = vmatpush1.msra.mxu0 0.0
    %1439 = vmatprep.subr.mxu0 0.0
    %1440 = vmatpush1.msra.mxu0 0.0
    %1441 = vmatprep.subr.mxu0 0.0
    %1442 = vmatpush1.msra.mxu0 0.0
    %1443 = vmatprep.subr.mxu0 0.0
    %1444 = vmatpush1.msra.mxu0 0.0
    %1445 = vmatprep.subr.mxu0 0.0
    %1446 = vmatpush1.msra.mxu0 0.0
    %1447 = vmatprep.subr.mxu0 0.0
    %1448 = vmatpush1.msra.mxu0 0.0
    %1449 = vmatprep.subr.mxu0 0.0
    %1450 = vmatpush1.msra.mxu0 0.0
    %1451 = vmatprep.mubr.f32.mxu0 0.0
    %1452 = vmatmul.mubr.f32.gmra.mrb[0].mxu0 %v1340
    %v1453 = vpop.f32.mrb[0].mxu0
    %v1454 = vadd.f32 %v1262, %v1453
    %v1455 = vpop.f32.mrb[0].mxu0
    %1456 = vmatprep.mubr.f32.mxu0 0.0
    %1457 = vmatmul.mubr.f32.gmra.mrb[0].mxu0 %v1343
    %v1458 = vpop.f32.mrb[0].mxu0
    %v1459 = vadd.f32 %v1267, %v1458
    %v1460 = vpop.f32.mrb[0].mxu0
    %1461 = vmatprep.mubr.f32.mxu0 0.0
    %1462 = vmatmul.mubr.f32.gmra.mrb[0].mxu0 %v1346
    %v1463 = vpop.f32.mrb[0].mxu0
    %v1464 = vadd.f32 %v1272, %v1463
    %v1465 = vpop.f32.mrb[0].mxu0
    %1466 = vmatprep.mubr.f32.mxu0 0.0
    %1467 = vmatmul.mubr.f32.gmra.mrb[0].mxu0 %v1349
    %v1468 = vpop.f32.mrb[0].mxu0
    %v1469 = vadd.f32 %v1277, %v1468
    %v1470 = vpop.f32.mrb[0].mxu0
    %1471 = vmatprep.mubr.f32.mxu0 0.0
    %1472 = vmatmul.mubr.f32.gmra.mrb[0].mxu0 %v1352
    %v1473 = vpop.f32.mrb[0].mxu0
    %v1474 = vadd.f32 %v1282, %v1473
    %v1475 = vpop.f32.mrb[0].mxu0
    %1476 = vmatprep.mubr.f32.mxu0 0.0
    %1477 = vmatmul.mubr.f32.gmra.mrb[0].mxu0 %v1355
    %v1478 = vpop.f32.mrb[0].mxu0
    %v1479 = vadd.f32 %v1287, %v1478
    %v1480 = vpop.f32.mrb[0].mxu0
    %1481 = vmatprep.mubr.f32.mxu0 0.0
    %1482 = vmatmul.mubr.f32.gmra.mrb[0].mxu0 %v1358
    %v1483 = vpop.f32.mrb[0].mxu0
    %v1484 = vadd.f32 %v1292, %v1483
    %v1485 = vpop.f32.mrb[0].mxu0
    %1486 = vmatprep.mubr.f32.mxu0 0.0
    %1487 = vmatmul.mubr.f32.gmra.mrb[0].mxu0 %v1361
    %v1488 = vpop.f32.mrb[0].mxu0
    %v1489 = vadd.f32 %v1297, %v1488
    %v1490 = vpop.f32.mrb[0].mxu0
    %1491 = vmatprep.mubr.f32.mxu0 0.0
    %1492 = vmatmul.mubr.f32.gmra.mrb[0].mxu0 %v1364
    %v1493 = vpop.f32.mrb[0].mxu0
    %v1494 = vadd.f32 %v1302, %v1493
    %v1495 = vpop.f32.mrb[0].mxu0
    %1496 = vmatprep.mubr.f32.mxu0 0.0
    %1497 = vmatmul.mubr.f32.gmra.mrb[0].mxu0 %v1367
    %v1498 = vpop.f32.mrb[0].mxu0
    %v1499 = vadd.f32 %v1307, %v1498
    %v1500 = vpop.f32.mrb[0].mxu0
    %1501 = vmatprep.mubr.f32.mxu0 0.0
    %1502 = vmatmul.mubr.f32.gmra.mrb[0].mxu0 %v1370
    %v1503 = vpop.f32.mrb[0].mxu0
    %v1504 = vadd.f32 %v1312, %v1503
    %v1505 = vpop.f32.mrb[0].mxu0
    %1506 = vmatprep.mubr.f32.mxu0 0.0
    %1507 = vmatmul.mubr.f32.gmra.mrb[0].mxu0 %v1373
    %v1508 = vpop.f32.mrb[0].mxu0
    %v1509 = vadd.f32 %v1317, %v1508
    %v1510 = vpop.f32.mrb[0].mxu0
    %1511 = vmatprep.mubr.f32.mxu0 0.0
    %1512 = vmatmul.mubr.f32.gmra.mrb[0].mxu0 %v1376
    %v1513 = vpop.f32.mrb[0].mxu0
    %v1514 = vadd.f32 %v1322, %v1513
    %v1515 = vpop.f32.mrb[0].mxu0
    %1516 = vmatprep.mubr.f32.mxu0 0.0
    %1517 = vmatmul.mubr.f32.gmra.mrb[0].mxu0 %v1379
    %v1518 = vpop.f32.mrb[0].mxu0
    %v1519 = vadd.f32 %v1327, %v1518
    %v1520 = vpop.f32.mrb[0].mxu0
    %1521 = vmatprep.mubr.f32.mxu0 0.0
    %1522 = vmatmul.mubr.f32.gmra.mrb[0].mxu0 %v1382
    %v1523 = vpop.f32.mrb[0].mxu0
    %v1524 = vadd.f32 %v1332, %v1523
    %v1525 = vpop.f32.mrb[0].mxu0
    %1526 = vmatprep.mubr.f32.mxu0 0.0
    %1527 = vmatmul.mubr.f32.gmra.mrb[0].mxu0 %v1385
    %v1528 = vpop.f32.mrb[0].mxu0
    %v1529 = vadd.f32 %v1337, %v1528
    %v1530 = vpop.f32.mrb[0].mxu0
    %1531 = vdwg.mxu0
    %v1532 = vmax.f32 %v1454, 0.0
    %v1533 = vmax.f32 %v1459, 0.0
    %v1534 = vmax.f32 %v1464, 0.0
    %v1535 = vmax.f32 %v1469, 0.0
    %v1536 = vmax.f32 %v1474, 0.0
    %v1537 = vmax.f32 %v1479, 0.0
    %v1538 = vmax.f32 %v1484, 0.0
    %v1539 = vmax.f32 %v1489, 0.0
    %v1540 = vmax.f32 %v1494, 0.0
    %v1541 = vmax.f32 %v1499, 0.0
    %v1542 = vmax.f32 %v1504, 0.0
    %v1543 = vmax.f32 %v1509, 0.0
    %v1544 = vmax.f32 %v1514, 0.0
    %v1545 = vmax.f32 %v1519, 0.0
    %v1546 = vmax.f32 %v1524, 0.0
    %v1547 = vmax.f32 %v1529, 0.0
    %v1548 = vld [vmem:[%s20] sm:$0xff]
    %v1549 = vld [vmem:[%s20 + $0x8] sm:$0x1]
    %v1550 = vld [vmem:[%s21] sm:$0xff]
    %v1551 = vld [vmem:[%s21 + $0x8] sm:$0x1]
    %1553 = vset.pattern.permute.xlu0 0
    %1554 = vperm.xlu0 %1553, %v1550
    %v1555 = vpop.permute.xlu0 %1554
    %1558 = vset.pattern.permute.xlu0 0
    %1559 = vperm.xlu0 %1558, %v1551
    %v1560 = vpop.permute.xlu0 %1559
    %1562 = vmatprep.subr.mxu0 0.0
    %1563 = vmatpush1.msra.mxu0 %v1532
    %1564 = vmatprep.subr.mxu0 0.0
    %1565 = vmatpush1.msra.mxu0 %v1533
    %1566 = vmatprep.subr.mxu0 0.0
    %1567 = vmatpush1.msra.mxu0 %v1534
    %1568 = vmatprep.subr.mxu0 0.0
    %1569 = vmatpush1.msra.mxu0 %v1535
    %1570 = vmatprep.subr.mxu0 0.0
    %1571 = vmatpush1.msra.mxu0 %v1536
    %1572 = vmatprep.subr.mxu0 0.0
    %1573 = vmatpush1.msra.mxu0 %v1537
    %1574 = vmatprep.subr.mxu0 0.0
    %1575 = vmatpush1.msra.mxu0 %v1538
    %1576 = vmatprep.subr.mxu0 0.0
    %1577 = vmatpush1.msra.mxu0 %v1539
    %1578 = vmatprep.subr.mxu0 0.0
    %1579 = vmatpush1.msra.mxu0 %v1540
    %1580 = vmatprep.subr.mxu0 0.0
    %1581 = vmatpush1.msra.mxu0 %v1541
    %1582 = vmatprep.subr.mxu0 0.0
    %1583 = vmatpush1.msra.mxu0 %v1542
    %1584 = vmatprep.subr.mxu0 0.0
    %1585 = vmatpush1.msra.mxu0 %v1543
    %1586 = vmatprep.subr.mxu0 0.0
    %1587 = vmatpush1.msra.mxu0 %v1544
    %1588 = vmatprep.subr.mxu0 0.0
    %1589 = vmatpush1.msra.mxu0 %v1545
    %1590 = vmatprep.subr.mxu0 0.0
    %1591 = vmatpush1.msra.mxu0 %v1546
    %1592 = vmatprep.subr.mxu0 0.0
    %1593 = vmatpush1.msra.mxu0 %v1547
    %1594 = vmatprep.subr.mxu0 0.0
    %1595 = vmatpush1.msra.mxu0 0.0
    %1596 = vmatprep.subr.mxu0 0.0
    %1597 = vmatpush1.msra.mxu0 0.0
    %1598 = vmatprep.subr.mxu0 0.0
    %1599 = vmatpush1.msra.mxu0 0.0
    %1600 = vmatprep.subr.mxu0 0.0
    %1601 = vmatpush1.msra.mxu0 0.0
    %1602 = vmatprep.subr.mxu0 0.0
    %1603 = vmatpush1.msra.mxu0 0.0
    %1604 = vmatprep.subr.mxu0 0.0
    %1605 = vmatpush1.msra.mxu0 0.0
    %1606 = vmatprep.subr.mxu0 0.0
    %1607 = vmatpush1.msra.mxu0 0.0
    %1608 = vmatprep.subr.mxu0 0.0
    %1609 = vmatpush1.msra.mxu0 0.0
    %1610 = vmatprep.subr.mxu0 0.0
    %1611 = vmatpush1.msra.mxu0 0.0
    %1612 = vmatprep.subr.mxu0 0.0
    %1613 = vmatpush1.msra.mxu0 0.0
    %1614 = vmatprep.subr.mxu0 0.0
    %1615 = vmatpush1.msra.mxu0 0.0
    %1616 = vmatprep.subr.mxu0 0.0
    %1617 = vmatpush1.msra.mxu0 0.0
    %1618 = vmatprep.subr.mxu0 0.0
    %1619 = vmatpush1.msra.mxu0 0.0
    %1620 = vmatprep.subr.mxu0 0.0
    %1621 = vmatpush1.msra.mxu0 0.0
    %1622 = vmatprep.subr.mxu0 0.0
    %1623 = vmatpush1.msra.mxu0 0.0
    %1624 = vmatprep.subr.mxu0 0.0
    %1625 = vmatpush1.msra.mxu0 0.0
    %1626 = vmatprep.mubr.f32.mxu0 0.0
    %1627 = vmatmul.mubr.f32.gmra.mrb[0].mxu0 %v1548
    %v1628 = vpop.f32.mrb[0].mxu0
    %v1629 = vadd.f32 %v1555, %v1628
    %v1630 = vpop.f32.mrb[0].mxu0
    %1631 = vmatprep.mubr.f32.mxu0 0.0
    %1632 = vmatmul.mubr.f32.gmra.mrb[0].mxu0 %v1549
    %v1633 = vpop.f32.mrb[0].mxu0
    %v1634 = vadd.f32 %v1560, %v1633
    %v1635 = vpop.f32.mrb[0].mxu0
    %1636 = vdwg.mxu0
    %vm1637 = vcmask 15360
    %1638 = vst.msk [vmem:[%s24] sm:$0xff] %vm1637, %v1629
    %vm1639 = vcmask 8192
    %1640 = vst.msk [vmem:[%s24 + $0x8] sm:$0x1] %vm1639, %v1634
    // Predicated region
    $region90: #{tpu_custom_call.1} parent=1 // pred_check
      _
    $region91: #{tpu_custom_call.1} parent=1 // pred_check_branch
      %1642 = sbr.rel (0) target = $region93
    $region92: #{tpu_custom_call.1} parent=1 // pred_region
      %s1644 = ssub.s32 1024, 1024
      %1645 = vsyncadd [#allocation6], %s1644
      %s1646 = sshll.u32 [#allocation5], 4
      %s1647 = int_to_ptr.vmem [resolvable:$true] %s1646
      %1652 = dma.vmem_to_hbm [thread:$0]  %s1647, 1024, %s22, [#allocation6], 256, 256, 16
    $region93: #{tpu_custom_call.1} parent=1 // pred_fallthru
      _
    // Predicated region
    $region94: #{tpu_custom_call.1} parent=1 // pred_check
      _
    $region95: #{tpu_custom_call.1} parent=1 // pred_check_branch
      %1654 = sbr.rel (0) target = $region97
    $region96: #{tpu_custom_call.1} parent=1 // pred_region
      %s1656 = ssub.s32 32, 32
      %1657 = vsyncadd [#allocation8], %s1656
      %s1659 = sshll.u32 [#allocation7], 4
      %s1660 = int_to_ptr.vmem [resolvable:$true] %s1659
      %1662 = dma.vmem_to_hbm [thread:$0]  %s1660, 32, %s23, [#allocation8]
    $region97: #{tpu_custom_call.1} parent=1 // pred_fallthru
      _
    // Predicated region
    $region98: #{tpu_custom_call.1} parent=1 // pred_check
      _
    $region99: #{tpu_custom_call.1} parent=1 // pred_check_branch
      %1664 = sbr.rel (0) target = $region101
    $region100: #{tpu_custom_call.1} parent=1 // pred_region
      _
    $region101: #{tpu_custom_call.1} parent=1 // pred_fallthru
      _
    // Predicated region
    $region102: #{tpu_custom_call.1} parent=1 // pred_check
      _
    $region103: #{tpu_custom_call.1} parent=1 // pred_check_branch
      %1666 = sbr.rel (0) target = $region105
    $region104: #{tpu_custom_call.1} parent=1 // pred_region
      %1667 = dma.done [#allocation6], 1024
    $region105: #{tpu_custom_call.1} parent=1 // pred_fallthru
      _
    // Predicated region
    $region106: #{tpu_custom_call.1} parent=1 // pred_check
      _
    $region107: #{tpu_custom_call.1} parent=1 // pred_check_branch
      %1669 = sbr.rel (0) target = $region109
    $region108: #{tpu_custom_call.1} parent=1 // pred_region
      %1670 = dma.done [#allocation8], 32
    $region109: #{tpu_custom_call.1} parent=1 // pred_fallthru
      _
    // Predicated region
    $region110: #{tpu_custom_call.1} parent=1 // pred_check
      _
    $region111: #{tpu_custom_call.1} parent=1 // pred_check_branch
      %1672 = sbr.rel (0) target = $region113
    $region112: #{tpu_custom_call.1} parent=1 // pred_region
      _
    $region113: #{tpu_custom_call.1} parent=1 // pred_fallthru
      _
    %1673 = vsyncpa [#allocation6], 1
    %1674 = vsyncpa [#allocation8], 1

</llo_original>
